<compile_context>
chip_gen: v7x
topology: tpu7x:2x2x1
jax: 0.10.0
libtpu: 0.0.40
codegen_flags: <defaults>
</compile_context>

<pallas_src>
import jax
import jax.numpy as jnp
from jax import lax
from jax.experimental import pallas as pl
from jax.experimental.pallas import tpu as pltpu


def _wf_kernel(fw1_ref, x_ref, res_ref, prew_ref, postw_ref, bias_ref,
               o_ref, pad_ref):
    # fw1_ref:   SMEM (1,)            fusion weight for x (fw[0] folded in prew)
    # x_ref:     VMEM (1, H, W, Cd)   skip input (bf16, natural channels)
    # res_ref:   VMEM (1, H, W, Cin)  residual input (bf16, natural channels)
    # prew_ref:  VMEM (Cin, Cd)       1x1 conv weight * fw[0] (bf16)
    # postw_ref: VMEM (3, 3*Cd, Cd)   3x3 conv weight * BN scale, per-kh im2col (bf16)
    # bias_ref:  VMEM (1, Cd)         folded BN bias (beta - mean*scale), f32
    # o_ref:     VMEM (1, H, W, Cd)   output (f32)
    # pad_ref:   VMEM (H+2, W+2, Cd)  persistent bf16 scratch for the 3x3 halo
    _, H, W, Cd = o_ref.shape
    Cin = res_ref.shape[3]
    w1 = fw1_ref[0]

    # --- pre_conv (1x1) == channel matmul; fw[0] already folded into prew ---
    res = res_ref[0].reshape(H * W, Cin)                       # bf16
    pre = jnp.dot(res, prew_ref[...], preferred_element_type=jnp.float32)

    # --- weighted fusion in f32, drop to bf16 for the 3x3 matmuls ---
    x = x_ref[0].reshape(H * W, Cd).astype(jnp.float32)
    fused = (pre + w1 * x).astype(jnp.bfloat16).reshape(H, W, Cd)

    # --- spatial zero-pad by 1 into the persistent scratch ---
    # Border is re-zeroed every step (cheap thin stores) so correctness does not
    # depend on program_id==0 running on every core under "parallel" sharding.
    zrow = jnp.zeros((1, W + 2, Cd), jnp.bfloat16)
    zcol = jnp.zeros((H, 1, Cd), jnp.bfloat16)
    pad_ref[0:1] = zrow
    pad_ref[H + 1:H + 2] = zrow
    pad_ref[1:H + 1, 0:1] = zcol
    pad_ref[1:H + 1, W + 1:W + 2] = zcol
    pad_ref[1:H + 1, 1:W + 1] = fused

    # --- 3x3 conv as 3 matmuls (one per kh), K = 3*Cd, f32 accumulation ---
    p = pad_ref[...]                                           # (H+2, W+2, Cd)
    slab = jnp.concatenate([p[:, kw:kw + W, :] for kw in range(3)],
                           axis=-1)                            # (H+2, W, 3*Cd)
    acc = jnp.zeros((H * W, Cd), jnp.float32)
    for kh in range(3):
        cols = slab[kh:kh + H].reshape(H * W, 3 * Cd)
        acc = acc + jnp.dot(cols, postw_ref[kh],
                            preferred_element_type=jnp.float32)

    # --- epilogue: BN scale already folded into postw; bias + ReLU6 ---
    out = jnp.clip(acc + bias_ref[...], 0.0, 6.0)
    o_ref[0] = out.reshape(H, W, Cd).astype(o_ref.dtype)


def _vmem_limit_bytes(H, W, Cd, Cin):
    act_in = 2 * 2 * H * W * (Cd + Cin) * 2        # bf16 x/res, double-buffered
    act_out = 2 * H * W * Cd * 4                   # f32 out, double-buffered
    wts = (Cin * Cd + 9 * Cd * Cd) * 2 + Cd * 4
    pad = (H + 2) * (W + 2) * Cd * 2
    temps = (H + 2) * W * 3 * Cd * 2 + H * W * 3 * Cd * 2 + 4 * H * W * Cd * 4
    total = act_in + act_out + wts + pad + temps + (4 << 20)
    return int(max(32 << 20, min(48 << 20, 2 * total)))


def wf_forward(x_nhwc, res_nhwc, params):
    """x_nhwc: (N,H,W,Cd), res_nhwc: (N,H,W,Cin). Returns (N,H,W,Cd) float32."""
    N, H, W, Cd = x_nhwc.shape
    Cin = res_nhwc.shape[3]

    # scalar fusion weights (tiny glue, stays in JAX)
    w = jnp.maximum(params["weights"], 0.0)
    fw = w / (jnp.sum(w) + params["eps"])
    fw1 = fw[1:2].astype(jnp.float32)                       # (1,) -> SMEM

    # fold BN (inference) into per-output-channel scale/bias
    scale = params["bn_gamma"] / jnp.sqrt(params["bn_var"] + params["bn_eps"])
    bias = (params["bn_beta"] - params["bn_mean"] * scale
            ).reshape(1, Cd).astype(jnp.float32)

    # fold fw[0] into the 1x1 weight; fold BN scale into the 3x3 output columns
    prew = (params["pre_w"] * fw[0]).astype(jnp.bfloat16)              # (Cin, Cd)
    postw = (params["post_w"] * scale).reshape(3, 3 * Cd, Cd
                                               ).astype(jnp.bfloat16)  # kh-major

    # ship activations as bf16 at natural channel counts (no HBM padding)
    xb = x_nhwc.astype(jnp.bfloat16)
    rb = res_nhwc.astype(jnp.bfloat16)

    out = pl.pallas_call(
        _wf_kernel,
        out_shape=jax.ShapeDtypeStruct((N, H, W, Cd), jnp.float32),
        grid_spec=pltpu.PrefetchScalarGridSpec(
            num_scalar_prefetch=0,
            grid=(N,),
            in_specs=[
                pl.BlockSpec(memory_space=pltpu.SMEM),                  # fw1
                pl.BlockSpec((1, H, W, Cd), lambda n: (n, 0, 0, 0)),    # x
                pl.BlockSpec((1, H, W, Cin), lambda n: (n, 0, 0, 0)),   # res
                # grid-invariant operands: constant index maps (no re-DMA)
                pl.BlockSpec((Cin, Cd), lambda n: (0, 0)),              # pre_w
                pl.BlockSpec((3, 3 * Cd, Cd), lambda n: (0, 0, 0)),     # post_w
                pl.BlockSpec((1, Cd), lambda n: (0, 0)),                # bias
            ],
            out_specs=pl.BlockSpec((1, H, W, Cd), lambda n: (n, 0, 0, 0)),
            scratch_shapes=[pltpu.VMEM((H + 2, W + 2, Cd), jnp.bfloat16)],
        ),
        compiler_params=pltpu.CompilerParams(
            dimension_semantics=("parallel",),
            vmem_limit_bytes=_vmem_limit_bytes(H, W, Cd, Cin)),
    )(fw1, xb, rb, prew, postw, bias)
    return out


def make_params(key, in_channels, decode_channels):
    k1, k2, k3, k4 = jax.random.split(key, 4)
    params = {
        # nn.Parameter(torch.ones(2))
        "weights": jnp.ones((2,), jnp.float32),
        "eps": jnp.float32(1e-8),
        # pre_conv: Conv2d(in, dec, k=1, bias=False) weight as (Cin, Cd) matmul
        "pre_w": (0.1 * jax.random.normal(k1, (in_channels, decode_channels))
                  ).astype(jnp.float32),
        # post_conv: Conv2d(dec, dec, k=3, pad=1, bias=False) weight in HWIO
        "post_w": (0.05 * jax.random.normal(
            k2, (3, 3, decode_channels, decode_channels))).astype(jnp.float32),
        # BatchNorm2d(dec) params + running stats (inference mode)
        "bn_gamma": 1.0 + 0.01 * jnp.arange(decode_channels, dtype=jnp.float32),
        "bn_beta": 0.02 * jnp.arange(decode_channels, dtype=jnp.float32) - 0.1,
        "bn_mean": (0.1 * jax.random.normal(k3, (decode_channels,))
                    ).astype(jnp.float32),
        "bn_var": (1.0 + 0.1 * jax.random.uniform(k4, (decode_channels,))
                   ).astype(jnp.float32),
        "bn_eps": jnp.float32(1e-5),
    }
    return params


def wf_reference(x_nhwc, res_nhwc, params):
    w = jnp.maximum(params["weights"], 0.0)
    fw = w / (jnp.sum(w) + params["eps"])
    Cin, Cd = params["pre_w"].shape
    pre = lax.conv_general_dilated(
        res_nhwc, params["pre_w"].reshape(1, 1, Cin, Cd), (1, 1), "VALID",
        dimension_numbers=("NHWC", "HWIO", "NHWC"))
    fused = fw[0] * pre + fw[1] * x_nhwc
    conv = lax.conv_general_dilated(
        fused, params["post_w"], (1, 1), "SAME",
        dimension_numbers=("NHWC", "HWIO", "NHWC"))
    bn = ((conv - params["bn_mean"]) / jnp.sqrt(params["bn_var"] + params["bn_eps"])
          * params["bn_gamma"] + params["bn_beta"])
    return jnp.clip(bn, 0.0, 6.0)


if __name__ == "__main__":
    key = jax.random.PRNGKey(0)
    kx, kr, kp = jax.random.split(key, 3)

    N, H, W = 2, 16, 16
    in_channels, decode_channels = 32, 32

    params = make_params(kp, in_channels, decode_channels)

    # PyTorch forward takes NCHW; generate NCHW then transpose to kernel layout.
    x_nchw = jax.random.normal(kx, (N, decode_channels, H, W), jnp.float32)
    res_nchw = jax.random.normal(kr, (N, in_channels, H, W), jnp.float32)
    x_nhwc = jnp.transpose(x_nchw, (0, 2, 3, 1))
    res_nhwc = jnp.transpose(res_nchw, (0, 2, 3, 1))

    out = wf_forward(x_nhwc, res_nhwc, params)
    out = jax.block_until_ready(out)

    ref = wf_reference(x_nhwc, res_nhwc, params)
    assert out.shape == (N, H, W, decode_channels)
    # bf16 activations/weights (f32 accumulation) vs f32 reference -> loosened
    # tolerance.
    max_err = float(jnp.max(jnp.abs(out - ref)))
    assert jnp.allclose(out, ref, atol=5e-2, rtol=5e-2), max_err

    print("KERNEL_OK")
</pallas_src>

<mosaic_0001>
module attributes {stable_mosaic.version = 11 : i64} {
  func.func @_wf_kernel(%arg0: i32, %arg1: memref<1xf32, #tpu.memory_space<smem>>, %arg2: memref<1x16x16x32xbf16, #tpu.memory_space<vmem>>, %arg3: memref<1x16x16x32xbf16, #tpu.memory_space<vmem>>, %arg4: memref<32x32xbf16, #tpu.memory_space<vmem>>, %arg5: memref<3x96x32xbf16, #tpu.memory_space<vmem>>, %arg6: memref<1x32xf32, #tpu.memory_space<vmem>>, %arg7: memref<1x16x16x32xf32, #tpu.memory_space<vmem>>, %arg8: memref<18x18x32xbf16, #tpu.memory_space<vmem>>) attributes {dimension_semantics = [#tpu.dimension_semantics<parallel>], iteration_bounds = array<i64: 2>, scalar_prefetch = 0 : i64, scratch_operands = 1 : i64, tpu.core_type = #tpu.core_type<tc>, window_params = [{transform_indices = @transform_0, window_bounds = array<i64: 1>}, {transform_indices = @transform_1, window_bounds = array<i64: 1, 16, 16, 32>}, {transform_indices = @transform_2, window_bounds = array<i64: 1, 16, 16, 32>}, {pipeline_mode = #tpu.pipeline_mode<synchronous>, transform_indices = @transform_3, window_bounds = array<i64: 32, 32>}, {pipeline_mode = #tpu.pipeline_mode<synchronous>, transform_indices = @transform_4, window_bounds = array<i64: 3, 96, 32>}, {pipeline_mode = #tpu.pipeline_mode<synchronous>, transform_indices = @transform_5, window_bounds = array<i64: 1, 32>}, {transform_indices = @transform_6, window_bounds = array<i64: 1, 16, 16, 32>}]} {
    %c0 = arith.constant 0 : index
    %0 = memref.load %arg1[%c0] : memref<1xf32, #tpu.memory_space<smem>>
    %c0_0 = arith.constant 0 : index
    %c0_1 = arith.constant 0 : index
    %c0_2 = arith.constant 0 : index
    %c0_3 = arith.constant 0 : index
    %1 = vector.load %arg3[%c0_0, %c0_1, %c0_2, %c0_3] : memref<1x16x16x32xbf16, #tpu.memory_space<vmem>>, vector<1x16x16x32xbf16>
    %2 = vector.shape_cast %1 : vector<1x16x16x32xbf16> to vector<16x16x32xbf16>
    %3 = vector.shape_cast %2 : vector<16x16x32xbf16> to vector<256x32xbf16>
    %c0_4 = arith.constant 0 : index
    %c0_5 = arith.constant 0 : index
    %4 = vector.load %arg4[%c0_4, %c0_5] : memref<32x32xbf16, #tpu.memory_space<vmem>>, vector<32x32xbf16>
    %cst = arith.constant dense<0.000000e+00> : vector<256x32xf32>
    %5 = tpu.matmul %3, %4, %cst {dimension_numbers = #tpu.dot_dimension_numbers<[1], [0], [0], [1], [0, 0, 1, 1], [], []>} : vector<256x32xbf16>, vector<32x32xbf16>, vector<256x32xf32> -> vector<256x32xf32>
    %c0_6 = arith.constant 0 : index
    %c0_7 = arith.constant 0 : index
    %c0_8 = arith.constant 0 : index
    %c0_9 = arith.constant 0 : index
    %6 = vector.load %arg2[%c0_6, %c0_7, %c0_8, %c0_9] : memref<1x16x16x32xbf16, #tpu.memory_space<vmem>>, vector<1x16x16x32xbf16>
    %7 = vector.shape_cast %6 : vector<1x16x16x32xbf16> to vector<16x16x32xbf16>
    %8 = vector.shape_cast %7 : vector<16x16x32xbf16> to vector<256x32xbf16>
    %9 = arith.extf %8 : vector<256x32xbf16> to vector<256x32xf32>
    %10 = vector.broadcast %0 : f32 to vector<256x32xf32>
    %11 = arith.mulf %10, %9 : vector<256x32xf32>
    %12 = arith.addf %5, %11 : vector<256x32xf32>
    %13 = arith.truncf %12 : vector<256x32xf32> to vector<256x32xbf16>
    %14 = vector.shape_cast %13 : vector<256x32xbf16> to vector<16x16x32xbf16>
    %cst_10 = arith.constant 0.000000e+00 : bf16
    %15 = vector.broadcast %cst_10 : bf16 to vector<1x18x32xbf16>
    %cst_11 = arith.constant 0.000000e+00 : bf16
    %16 = vector.broadcast %cst_11 : bf16 to vector<16x1x32xbf16>
    %c0_12 = arith.constant 0 : index
    %c0_13 = arith.constant 0 : index
    %c0_14 = arith.constant 0 : index
    %17 = vector.load %arg8[%c0_12, %c0_13, %c0_14] : memref<18x18x32xbf16, #tpu.memory_space<vmem>>, vector<1x18x32xbf16>
    tpu.vector_store %arg8[%c0_12, %c0_13, %c0_14], %15 {strides = array<i32>} : memref<18x18x32xbf16, #tpu.memory_space<vmem>>, vector<1x18x32xbf16>,
    %c17 = arith.constant 17 : index
    %c0_15 = arith.constant 0 : index
    %c0_16 = arith.constant 0 : index
    %18 = vector.load %arg8[%c17, %c0_15, %c0_16] : memref<18x18x32xbf16, #tpu.memory_space<vmem>>, vector<1x18x32xbf16>
    tpu.vector_store %arg8[%c17, %c0_15, %c0_16], %15 {strides = array<i32>} : memref<18x18x32xbf16, #tpu.memory_space<vmem>>, vector<1x18x32xbf16>,
    %c1 = arith.constant 1 : index
    %c0_17 = arith.constant 0 : index
    %c0_18 = arith.constant 0 : index
    %19 = vector.load %arg8[%c1, %c0_17, %c0_18] : memref<18x18x32xbf16, #tpu.memory_space<vmem>>, vector<16x1x32xbf16>
    tpu.vector_store %arg8[%c1, %c0_17, %c0_18], %16 {strides = array<i32>} : memref<18x18x32xbf16, #tpu.memory_space<vmem>>, vector<16x1x32xbf16>,
    %c1_19 = arith.constant 1 : index
    %c17_20 = arith.constant 17 : index
    %c0_21 = arith.constant 0 : index
    %20 = vector.load %arg8[%c1_19, %c17_20, %c0_21] : memref<18x18x32xbf16, #tpu.memory_space<vmem>>, vector<16x1x32xbf16>
    tpu.vector_store %arg8[%c1_19, %c17_20, %c0_21], %16 {strides = array<i32>} : memref<18x18x32xbf16, #tpu.memory_space<vmem>>, vector<16x1x32xbf16>,
    %c1_22 = arith.constant 1 : index
    %c1_23 = arith.constant 1 : index
    %c0_24 = arith.constant 0 : index
    %21 = vector.load %arg8[%c1_22, %c1_23, %c0_24] : memref<18x18x32xbf16, #tpu.memory_space<vmem>>, vector<16x16x32xbf16>
    tpu.vector_store %arg8[%c1_22, %c1_23, %c0_24], %14 {strides = array<i32>} : memref<18x18x32xbf16, #tpu.memory_space<vmem>>, vector<16x16x32xbf16>,
    %c0_25 = arith.constant 0 : index
    %c0_26 = arith.constant 0 : index
    %c0_27 = arith.constant 0 : index
    %22 = vector.load %arg8[%c0_25, %c0_26, %c0_27] : memref<18x18x32xbf16, #tpu.memory_space<vmem>>, vector<18x18x32xbf16>
    %23 = vector.extract_strided_slice %22 {offsets = [0, 0, 0], sizes = [18, 16, 32], strides = [1, 1, 1]} : vector<18x18x32xbf16> to vector<18x16x32xbf16>
    %24 = vector.extract_strided_slice %22 {offsets = [0, 1, 0], sizes = [18, 16, 32], strides = [1, 1, 1]} : vector<18x18x32xbf16> to vector<18x16x32xbf16>
    %25 = vector.extract_strided_slice %22 {offsets = [0, 2, 0], sizes = [18, 16, 32], strides = [1, 1, 1]} : vector<18x18x32xbf16> to vector<18x16x32xbf16>
    %26 = tpu.concatenate %23, %24, %25 in 2 : vector<18x16x32xbf16>, vector<18x16x32xbf16>, vector<18x16x32xbf16> -> vector<18x16x96xbf16>
    %cst_28 = arith.constant 0.000000e+00 : f32
    %27 = vector.broadcast %cst_28 : f32 to vector<256x32xf32>
    %28 = vector.extract_strided_slice %26 {offsets = [0, 0, 0], sizes = [16, 16, 96], strides = [1, 1, 1]} : vector<18x16x96xbf16> to vector<16x16x96xbf16>
    %29 = vector.shape_cast %28 : vector<16x16x96xbf16> to vector<256x96xbf16>
    %c0_29 = arith.constant 0 : index
    %c0_30 = arith.constant 0 : index
    %c0_31 = arith.constant 0 : index
    %30 = vector.load %arg5[%c0_29, %c0_30, %c0_31] : memref<3x96x32xbf16, #tpu.memory_space<vmem>>, vector<1x96x32xbf16>
    %31 = vector.shape_cast %30 : vector<1x96x32xbf16> to vector<96x32xbf16>
    %cst_32 = arith.constant dense<0.000000e+00> : vector<256x32xf32>
    %32 = tpu.matmul %29, %31, %cst_32 {dimension_numbers = #tpu.dot_dimension_numbers<[1], [0], [0], [1], [0, 0, 1, 1], [], []>} : vector<256x96xbf16>, vector<96x32xbf16>, vector<256x32xf32> -> vector<256x32xf32>
    %33 = arith.addf %27, %32 : vector<256x32xf32>
    %34 = vector.extract_strided_slice %26 {offsets = [1, 0, 0], sizes = [16, 16, 96], strides = [1, 1, 1]} : vector<18x16x96xbf16> to vector<16x16x96xbf16>
    %35 = vector.shape_cast %34 : vector<16x16x96xbf16> to vector<256x96xbf16>
    %c1_33 = arith.constant 1 : index
    %c0_34 = arith.constant 0 : index
    %c0_35 = arith.constant 0 : index
    %36 = vector.load %arg5[%c1_33, %c0_34, %c0_35] : memref<3x96x32xbf16, #tpu.memory_space<vmem>>, vector<1x96x32xbf16>
    %37 = vector.shape_cast %36 : vector<1x96x32xbf16> to vector<96x32xbf16>
    %cst_36 = arith.constant dense<0.000000e+00> : vector<256x32xf32>
    %38 = tpu.matmul %35, %37, %cst_36 {dimension_numbers = #tpu.dot_dimension_numbers<[1], [0], [0], [1], [0, 0, 1, 1], [], []>} : vector<256x96xbf16>, vector<96x32xbf16>, vector<256x32xf32> -> vector<256x32xf32>
    %39 = arith.addf %33, %38 : vector<256x32xf32>
    %40 = vector.extract_strided_slice %26 {offsets = [2, 0, 0], sizes = [16, 16, 96], strides = [1, 1, 1]} : vector<18x16x96xbf16> to vector<16x16x96xbf16>
    %41 = vector.shape_cast %40 : vector<16x16x96xbf16> to vector<256x96xbf16>
    %c2 = arith.constant 2 : index
    %c0_37 = arith.constant 0 : index
    %c0_38 = arith.constant 0 : index
    %42 = vector.load %arg5[%c2, %c0_37, %c0_38] : memref<3x96x32xbf16, #tpu.memory_space<vmem>>, vector<1x96x32xbf16>
    %43 = vector.shape_cast %42 : vector<1x96x32xbf16> to vector<96x32xbf16>
    %cst_39 = arith.constant dense<0.000000e+00> : vector<256x32xf32>
    %44 = tpu.matmul %41, %43, %cst_39 {dimension_numbers = #tpu.dot_dimension_numbers<[1], [0], [0], [1], [0, 0, 1, 1], [], []>} : vector<256x96xbf16>, vector<96x32xbf16>, vector<256x32xf32> -> vector<256x32xf32>
    %45 = arith.addf %39, %44 : vector<256x32xf32>
    %c0_40 = arith.constant 0 : index
    %c0_41 = arith.constant 0 : index
    %46 = vector.load %arg6[%c0_40, %c0_41] : memref<1x32xf32, #tpu.memory_space<vmem>>, vector<1x32xf32>
    %47 = vector.broadcast %46 : vector<1x32xf32> to vector<256x32xf32>
    %48 = arith.addf %45, %47 : vector<256x32xf32>
    %cst_42 = arith.constant 0.000000e+00 : f32
    %cst_43 = arith.constant 6.000000e+00 : f32
    %49 = vector.broadcast %cst_42 : f32 to vector<256x32xf32>
    %50 = arith.maximumf %49, %48 : vector<256x32xf32>
    %51 = vector.broadcast %cst_43 : f32 to vector<256x32xf32>
    %52 = arith.minimumf %51, %50 : vector<256x32xf32>
    %53 = vector.shape_cast %52 : vector<256x32xf32> to vector<16x16x32xf32>
    %c0_44 = arith.constant 0 : index
    %c0_45 = arith.constant 0 : index
    %c0_46 = arith.constant 0 : index
    %c0_47 = arith.constant 0 : index
    %54 = vector.load %arg7[%c0_44, %c0_45, %c0_46, %c0_47] : memref<1x16x16x32xf32, #tpu.memory_space<vmem>>, vector<1x16x16x32xf32>
    %55 = vector.shape_cast %54 : vector<1x16x16x32xf32> to vector<16x16x32xf32>
    %56 = vector.shape_cast %53 : vector<16x16x32xf32> to vector<1x16x16x32xf32>
    tpu.vector_store %arg7[%c0_44, %c0_45, %c0_46, %c0_47], %56 {strides = array<i32>} : memref<1x16x16x32xf32, #tpu.memory_space<vmem>>, vector<1x16x16x32xf32>,
    return
  }
  func.func @transform_0(%arg0: i32) -> i32 {
    %c0_i32 = arith.constant 0 : i32
    %c0_i32_0 = arith.constant 0 : i32
    return %c0_i32 : i32
  }
  func.func @transform_1(%arg0: i32) -> (i32, i32, i32, i32) {
    %c0_i32 = arith.constant 0 : i32
    %c0_i32_0 = arith.constant 0 : i32
    %c0_i32_1 = arith.constant 0 : i32
    %c0_i32_2 = arith.constant 0 : i32
    return %arg0, %c0_i32, %c0_i32_0, %c0_i32_1 : i32, i32, i32, i32
  }
  func.func @transform_2(%arg0: i32) -> (i32, i32, i32, i32) {
    %c0_i32 = arith.constant 0 : i32
    %c0_i32_0 = arith.constant 0 : i32
    %c0_i32_1 = arith.constant 0 : i32
    %c0_i32_2 = arith.constant 0 : i32
    return %arg0, %c0_i32, %c0_i32_0, %c0_i32_1 : i32, i32, i32, i32
  }
  func.func @transform_3(%arg0: i32) -> (i32, i32) {
    %c0_i32 = arith.constant 0 : i32
    %c0_i32_0 = arith.constant 0 : i32
    %c0_i32_1 = arith.constant 0 : i32
    return %c0_i32, %c0_i32_0 : i32, i32
  }
  func.func @transform_4(%arg0: i32) -> (i32, i32, i32) {
    %c0_i32 = arith.constant 0 : i32
    %c0_i32_0 = arith.constant 0 : i32
    %c0_i32_1 = arith.constant 0 : i32
    %c0_i32_2 = arith.constant 0 : i32
    return %c0_i32, %c0_i32_0, %c0_i32_1 : i32, i32, i32
  }
  func.func @transform_5(%arg0: i32) -> (i32, i32) {
    %c0_i32 = arith.constant 0 : i32
    %c0_i32_0 = arith.constant 0 : i32
    %c0_i32_1 = arith.constant 0 : i32
    return %c0_i32, %c0_i32_0 : i32, i32
  }
  func.func @transform_6(%arg0: i32) -> (i32, i32, i32, i32) {
    %c0_i32 = arith.constant 0 : i32
    %c0_i32_0 = arith.constant 0 : i32
    %c0_i32_1 = arith.constant 0 : i32
    %c0_i32_2 = arith.constant 0 : i32
    return %arg0, %c0_i32, %c0_i32_0, %c0_i32_1 : i32, i32, i32, i32
  }
}

</mosaic_0001>

<llo_original>
// kernel: tpu_custom_call.1
$region0: #{tpu_custom_call.1}
  #allocation0 [shape = 'u32[]', space=smem, size = 0x4, offset = 0x4, fixed_abs, tag = 'smem constant byte address 0x4 - core index']
  #allocation1 [shape = 'u32[144,128]{1,0:T(1,128)}', space=vmem, size = 0x12000, scoped, tag = 'internal scratch']
  #allocation2 [shape = 'bf16[18,18,32]{2,1,0:T(8,128)(2,1)}', space=vmem, size = 0x1b000, scoped, tag = 'scratch operand']
  #allocation3 [shape = 'f32[1]{0:T(128)S(6)}', space=smem, size = 0x200, scoped, tag = 'scoped memory for tpu_custom_call.1']
  %s0 = inlined_call_operand.<no memory space> [shape: f32[1], index: 0, kind: input, shape index: {}]
  %s1 = inlined_call_operand.hbm [shape: bf16[2,16,16,32], index: 1, kind: input, shape index: {}]
  %s2 = inlined_call_operand.hbm [shape: bf16[2,16,16,32], index: 2, kind: input, shape index: {}]
  %s3 = inlined_call_operand.vmem [shape: bf16[32,32], index: 3, kind: input, shape index: {}]
  %s4 = inlined_call_operand.vmem [shape: bf16[3,96,32], index: 4, kind: input, shape index: {}]
  %s5 = inlined_call_operand.vmem [shape: f32[1,32], index: 5, kind: input, shape index: {}]
  %s6 = inlined_call_operand.hbm [shape: f32[2,16,16,32], index: 6, kind: output, shape index: {}]
  %s7 = sld [smem:[#allocation0]]
  $region65: #{tpu_custom_call.1} parent=0
    _
  %s9 = ssub.s32 1, %s7
  %s10 = scalar_select 0, %s9, %s7
  %11 = sst [smem:[#allocation3]] %s0
  $region1: #{tpu_custom_call.1} parent=0
    #allocation4 [shape = 'u8[131072]{0}', space=vmem, size = 0x20000, scoped, tag = 'input window, operand 1']
    #allocation5 [shape = 's32[2]{0}', space=sflag, size = 0x8, scoped, tag = 'scoped memory for tpu_custom_call.1']
    #allocation6 [shape = 's32[2]{0}', space=sflag, size = 0x8, scoped, tag = 'scoped memory for tpu_custom_call.1']
    #allocation7 [shape = 'u8[131072]{0}', space=vmem, size = 0x20000, scoped, tag = 'input window, operand 2']
    #allocation8 [shape = 's32[2]{0}', space=sflag, size = 0x8, scoped, tag = 'scoped memory for tpu_custom_call.1']
    #allocation9 [shape = 'u8[262144]{0}', space=vmem, size = 0x40000, scoped, tag = 'output window, operand 0']
    %12 = vsyncpa [#allocation5], 0
    %s13 = scalar_lea.sflag [#allocation5], 1
    %14 = vsyncpa %s13, 0
    %15 = vsyncpa [#allocation8], 0
    %s16 = scalar_lea.sflag [#allocation8], 1
    %17 = vsyncpa %s16, 0
    %18 = vsyncpa [#allocation6], 0
    %s19 = scalar_lea.sflag [#allocation6], 1
    %20 = vsyncpa %s19, 0
    loop: start=0, step=1, limit=4
    $region2: #{tpu_custom_call.1} parent=1 // loop_pre_header
      _
    $region3: #{tpu_custom_call.1} parent=1 // loop_header
      %s22 = sphi 0, %s26
      %p23 = scmp.ge.s32.totalorder %s22, 4
      %s30 = sphi 0, %s30
      %s32 = sphi 0, %s30
      %s33 = sphi 0, %s32
      %s47 = sphi 0, %s33
      %s53 = sphi 0, %s55
      %s56 = sphi 0, %s53
      %s57 = sphi 0, %s56
      %s73 = sphi 0, %s57
      %s79 = sphi 0, %s81
      %s82 = sphi 0, %s79
      %s83 = sphi 0, %s82
      %s99 = sphi 0, %s83
      %s103 = sphi 0, %s103
      %s105 = sphi 0, %s103
      %s106 = sphi 0, %s105
      %s120 = sphi 0, %s106
      %s124 = sphi 0, %s124
      %s126 = sphi 0, %s124
      %s127 = sphi 0, %s126
      %s141 = sphi 0, %s127
      %s145 = sphi 0, %s145
      %s147 = sphi 0, %s145
      %s148 = sphi 0, %s147
      %s162 = sphi 0, %s148
      %s168 = sphi 0, %s170
      %s171 = sphi 0, %s168
      %s172 = sphi 0, %s171
      %s188 = sphi 0, %s172
    $region4: #{tpu_custom_call.1} parent=1 // loop_header_branch
      %25 = sbr.rel (%p23) target = $region8
    $region5: #{tpu_custom_call.1} parent=1 // loop_body
      %s27 = ssub.s32 %s22, 1
      %s28 = ssub.s32 %s22, 2
      %s29 = sadd.s32 %s22, 1
      %s31 = sadd.s32 %s30, 1
      %p34 = scmp.eq.s32.totalorder %s22, 1
      %p35 = scmp.ne.s32.totalorder %s30, %s32
      %p36 = scmp.eq.s32.totalorder %s22, 0
      %p37 = por %p35, %p36
      %p38 = scmp.ne.s32.totalorder %s30, %s32
      %p39 = scmp.eq.s32.totalorder %s27, 1
      %p40 = por %p38, %p39
      %p41 = scmp.ne.s32.totalorder %s32, %s33
      %p42 = scmp.eq.s32.totalorder %s27, 0
      %p43 = por %p41, %p42
      %p44 = scmp.ne.s32.totalorder %s32, %s33
      %p45 = scmp.eq.s32.totalorder %s28, 1
      %p46 = por %p44, %p45
      %p48 = scmp.ne.s32.totalorder %s33, %s47
      %p49 = scmp.eq.s32.totalorder %s28, 0
      %p50 = por %p48, %p49
      %s51 = ssub.s32 %s22, %s29
      %p52 = scmp.eq.s32.totalorder %s51, 0
      %s54 = sadd.s32 %s53, 1
      %s55 = scalar_select %p52, %s53, %s54
      %p58 = pneg %p52
      %p59 = scmp.eq.s32.totalorder %s22, 1
      %p60 = por %p58, %p59
      %p61 = scmp.ne.s32.totalorder %s53, %s56
      %p62 = scmp.eq.s32.totalorder %s22, 0
      %p63 = por %p61, %p62
      %p64 = scmp.ne.s32.totalorder %s53, %s56
      %p65 = scmp.eq.s32.totalorder %s27, 1
      %p66 = por %p64, %p65
      %p67 = scmp.ne.s32.totalorder %s56, %s57
      %p68 = scmp.eq.s32.totalorder %s27, 0
      %p69 = por %p67, %p68
      %p70 = scmp.ne.s32.totalorder %s56, %s57
      %p71 = scmp.eq.s32.totalorder %s28, 1
      %p72 = por %p70, %p71
      %p74 = scmp.ne.s32.totalorder %s57, %s73
      %p75 = scmp.eq.s32.totalorder %s28, 0
      %p76 = por %p74, %p75
      %s77 = ssub.s32 %s22, %s29
      %p78 = scmp.eq.s32.totalorder %s77, 0
      %s80 = sadd.s32 %s79, 1
      %s81 = scalar_select %p78, %s79, %s80
      %p84 = pneg %p78
      %p85 = scmp.eq.s32.totalorder %s22, 1
      %p86 = por %p84, %p85
      %p87 = scmp.ne.s32.totalorder %s79, %s82
      %p88 = scmp.eq.s32.totalorder %s22, 0
      %p89 = por %p87, %p88
      %p90 = scmp.ne.s32.totalorder %s79, %s82
      %p91 = scmp.eq.s32.totalorder %s27, 1
      %p92 = por %p90, %p91
      %p93 = scmp.ne.s32.totalorder %s82, %s83
      %p94 = scmp.eq.s32.totalorder %s27, 0
      %p95 = por %p93, %p94
      %p96 = scmp.ne.s32.totalorder %s82, %s83
      %p97 = scmp.eq.s32.totalorder %s28, 1
      %p98 = por %p96, %p97
      %p100 = scmp.ne.s32.totalorder %s83, %s99
      %p101 = scmp.eq.s32.totalorder %s28, 0
      %p102 = por %p100, %p101
      %s104 = sadd.s32 %s103, 1
      %p107 = scmp.eq.s32.totalorder %s22, 1
      %p108 = scmp.ne.s32.totalorder %s103, %s105
      %p109 = scmp.eq.s32.totalorder %s22, 0
      %p110 = por %p108, %p109
      %p111 = scmp.ne.s32.totalorder %s103, %s105
      %p112 = scmp.eq.s32.totalorder %s27, 1
      %p113 = por %p111, %p112
      %p114 = scmp.ne.s32.totalorder %s105, %s106
      %p115 = scmp.eq.s32.totalorder %s27, 0
      %p116 = por %p114, %p115
      %p117 = scmp.ne.s32.totalorder %s105, %s106
      %p118 = scmp.eq.s32.totalorder %s28, 1
      %p119 = por %p117, %p118
      %p121 = scmp.ne.s32.totalorder %s106, %s120
      %p122 = scmp.eq.s32.totalorder %s28, 0
      %p123 = por %p121, %p122
      %s125 = sadd.s32 %s124, 1
      %p128 = scmp.eq.s32.totalorder %s22, 1
      %p129 = scmp.ne.s32.totalorder %s124, %s126
      %p130 = scmp.eq.s32.totalorder %s22, 0
      %p131 = por %p129, %p130
      %p132 = scmp.ne.s32.totalorder %s124, %s126
      %p133 = scmp.eq.s32.totalorder %s27, 1
      %p134 = por %p132, %p133
      %p135 = scmp.ne.s32.totalorder %s126, %s127
      %p136 = scmp.eq.s32.totalorder %s27, 0
      %p137 = por %p135, %p136
      %p138 = scmp.ne.s32.totalorder %s126, %s127
      %p139 = scmp.eq.s32.totalorder %s28, 1
      %p140 = por %p138, %p139
      %p142 = scmp.ne.s32.totalorder %s127, %s141
      %p143 = scmp.eq.s32.totalorder %s28, 0
      %p144 = por %p142, %p143
      %s146 = sadd.s32 %s145, 1
      %p149 = scmp.eq.s32.totalorder %s22, 1
      %p150 = scmp.ne.s32.totalorder %s145, %s147
      %p151 = scmp.eq.s32.totalorder %s22, 0
      %p152 = por %p150, %p151
      %p153 = scmp.ne.s32.totalorder %s145, %s147
      %p154 = scmp.eq.s32.totalorder %s27, 1
      %p155 = por %p153, %p154
      %p156 = scmp.ne.s32.totalorder %s147, %s148
      %p157 = scmp.eq.s32.totalorder %s27, 0
      %p158 = por %p156, %p157
      %p159 = scmp.ne.s32.totalorder %s147, %s148
      %p160 = scmp.eq.s32.totalorder %s28, 1
      %p161 = por %p159, %p160
      %p163 = scmp.ne.s32.totalorder %s148, %s162
      %p164 = scmp.eq.s32.totalorder %s28, 0
      %p165 = por %p163, %p164
      %s166 = ssub.s32 %s22, %s29
      %p167 = scmp.eq.s32.totalorder %s166, 0
      %s169 = sadd.s32 %s168, 1
      %s170 = scalar_select %p167, %s168, %s169
      %p173 = pneg %p167
      %p174 = scmp.eq.s32.totalorder %s22, 1
      %p175 = por %p173, %p174
      %p176 = scmp.ne.s32.totalorder %s168, %s171
      %p177 = scmp.eq.s32.totalorder %s22, 0
      %p178 = por %p176, %p177
      %p179 = scmp.ne.s32.totalorder %s168, %s171
      %p180 = scmp.eq.s32.totalorder %s27, 1
      %p181 = por %p179, %p180
      %p182 = scmp.ne.s32.totalorder %s171, %s172
      %p183 = scmp.eq.s32.totalorder %s27, 0
      %p184 = por %p182, %p183
      %p185 = scmp.ne.s32.totalorder %s171, %s172
      %p186 = scmp.eq.s32.totalorder %s28, 1
      %p187 = por %p185, %p186
      %p189 = scmp.ne.s32.totalorder %s172, %s188
      %p190 = scmp.eq.s32.totalorder %s28, 0
      %p191 = por %p189, %p190
      %p192 = scmp.le.s32.totalorder 1, %s22
      %p193 = scmp.lt.s32.totalorder %s22, 3
      %p194 = pnand %p192, %p193
      %p195 = pneg %p194
      // Predicated region
      $region9: #{tpu_custom_call.1} parent=5 // pred_check
        _
      $region10: #{tpu_custom_call.1} parent=5 // pred_check_branch
        %197 = sbr.rel (%p194) target = $region12
      $region11: #{tpu_custom_call.1} parent=5 // pred_region
        %s198 = ssub.s32 %s22, 1
        // Predicated region
        $region13: #{tpu_custom_call.1} parent=11 // pred_check
          %p199 = pneg %p43
        $region14: #{tpu_custom_call.1} parent=11 // pred_check_branch
          %201 = sbr.rel (%p199) target = $region16
        $region15: #{tpu_custom_call.1} parent=11 // pred_region
          _
        $region16: #{tpu_custom_call.1} parent=11 // pred_fallthru
          _
        // Predicated region
        $region17: #{tpu_custom_call.1} parent=11 // pred_check
          %p202 = pneg %p116
        $region18: #{tpu_custom_call.1} parent=11 // pred_check_branch
          %204 = sbr.rel (%p202) target = $region20
        $region19: #{tpu_custom_call.1} parent=11 // pred_region
          _
        $region20: #{tpu_custom_call.1} parent=11 // pred_fallthru
          _
        // Predicated region
        $region21: #{tpu_custom_call.1} parent=11 // pred_check
          %p205 = pneg %p137
        $region22: #{tpu_custom_call.1} parent=11 // pred_check_branch
          %207 = sbr.rel (%p205) target = $region24
        $region23: #{tpu_custom_call.1} parent=11 // pred_region
          _
        $region24: #{tpu_custom_call.1} parent=11 // pred_fallthru
          _
        // Predicated region
        $region25: #{tpu_custom_call.1} parent=11 // pred_check
          %p208 = pneg %p158
        $region26: #{tpu_custom_call.1} parent=11 // pred_check_branch
          %210 = sbr.rel (%p208) target = $region28
        $region27: #{tpu_custom_call.1} parent=11 // pred_region
          _
        $region28: #{tpu_custom_call.1} parent=11 // pred_fallthru
          _
      $region12: #{tpu_custom_call.1} parent=5 // pred_fallthru
        _
      %p211 = scmp.lt.s32.totalorder %s22, 2
      // Predicated region
      $region29: #{tpu_custom_call.1} parent=5 // pred_check
        %p212 = pneg %p211
      $region30: #{tpu_custom_call.1} parent=5 // pred_check_branch
        %214 = sbr.rel (%p212) target = $region32
      $region31: #{tpu_custom_call.1} parent=5 // pred_region
        // Predicated region
        $region33: #{tpu_custom_call.1} parent=31 // pred_check
          %p215 = pneg %p63
        $region34: #{tpu_custom_call.1} parent=31 // pred_check_branch
          %217 = sbr.rel (%p215) target = $region36
        $region35: #{tpu_custom_call.1} parent=31 // pred_region
          %s218 = sand.u32 %s53, 1
          %s219 = scalar_lea.sflag [#allocation5], %s218
          %s220 = sand.u32 %s53, 1
          %s221 = smul.addr %s220, 128
          %s222 = scalar_lea.vmem [#allocation4], %s221
          %s224 = ssub.s32 2048, 2048
          %225 = vsyncadd %s219, %s224
          %s226 = smul.addr %s22, 32
          %s227 = smul.addr %s226, 64
          %s228 = scalar_lea.hbm %s1, %s227
          %s229 = sshll.u32 %s222, 4
          %s230 = int_to_ptr.vmem [resolvable:$true] %s229
          %235 = dma.hbm_to_vmem [thread:$0]  %s228, 2048, %s230, %s219, 64, 64, 4
        $region36: #{tpu_custom_call.1} parent=31 // pred_fallthru
          _
        // Predicated region
        $region37: #{tpu_custom_call.1} parent=31 // pred_check
          %p236 = pneg %p89
        $region38: #{tpu_custom_call.1} parent=31 // pred_check_branch
          %238 = sbr.rel (%p236) target = $region40
        $region39: #{tpu_custom_call.1} parent=31 // pred_region
          %s239 = sand.u32 %s79, 1
          %s240 = scalar_lea.sflag [#allocation8], %s239
          %s241 = sand.u32 %s79, 1
          %s242 = smul.addr %s241, 128
          %s243 = scalar_lea.vmem [#allocation7], %s242
          %s245 = ssub.s32 2048, 2048
          %246 = vsyncadd %s240, %s245
          %s247 = smul.addr %s22, 32
          %s248 = smul.addr %s247, 64
          %s249 = scalar_lea.hbm %s2, %s248
          %s250 = sshll.u32 %s243, 4
          %s251 = int_to_ptr.vmem [resolvable:$true] %s250
          %256 = dma.hbm_to_vmem [thread:$0]  %s249, 2048, %s251, %s240, 64, 64, 4
        $region40: #{tpu_custom_call.1} parent=31 // pred_fallthru
          _
      $region32: #{tpu_custom_call.1} parent=5 // pred_fallthru
        _
      %p257 = scmp.le.s32.totalorder 1, %s22
      %p258 = scmp.lt.s32.totalorder %s22, 3
      %p259 = pnand %p257, %p258
      %p260 = pneg %p259
      // Predicated region
      $region41: #{tpu_custom_call.1} parent=5 // pred_check
        _
      $region42: #{tpu_custom_call.1} parent=5 // pred_check_branch
        %262 = sbr.rel (%p259) target = $region44
      $region43: #{tpu_custom_call.1} parent=5 // pred_region
        %s263 = ssub.s32 %s22, 1
        %s264 = sand.u32 %s56, 1
        %s265 = scalar_lea.sflag [#allocation5], %s264
        %s266 = sand.u32 %s56, 1
        %s267 = smul.addr %s266, 128
        %s268 = scalar_lea.vmem [#allocation4], %s267
        // Predicated region
        $region45: #{tpu_custom_call.1} parent=43 // pred_check
          %p269 = pneg %p69
        $region46: #{tpu_custom_call.1} parent=43 // pred_check_branch
          %271 = sbr.rel (%p269) target = $region48
        $region47: #{tpu_custom_call.1} parent=43 // pred_region
          %272 = dma.done %s265, 2048
        $region48: #{tpu_custom_call.1} parent=43 // pred_fallthru
          _
        %s273 = sand.u32 %s82, 1
        %s274 = scalar_lea.sflag [#allocation8], %s273
        %s275 = sand.u32 %s82, 1
        %s276 = smul.addr %s275, 128
        %s277 = scalar_lea.vmem [#allocation7], %s276
        // Predicated region
        $region49: #{tpu_custom_call.1} parent=43 // pred_check
          %p278 = pneg %p95
        $region50: #{tpu_custom_call.1} parent=43 // pred_check_branch
          %280 = sbr.rel (%p278) target = $region52
        $region51: #{tpu_custom_call.1} parent=43 // pred_region
          %281 = dma.done %s274, 2048
        $region52: #{tpu_custom_call.1} parent=43 // pred_fallthru
          _
        %p282 = pneg %p43
        %p283 = pneg %p40
        %s284 = sand.u32 %s56, 1
        %s285 = scalar_lea.sflag [#allocation5], %s284
        %s286 = sand.u32 %s56, 1
        %s287 = smul.addr %s286, 128
        %s288 = scalar_lea.vmem [#allocation4], %s287
        %p289 = pneg %p69
        %p290 = pneg %p66
        %s291 = sand.u32 %s82, 1
        %s292 = scalar_lea.sflag [#allocation8], %s291
        %s293 = sand.u32 %s82, 1
        %s294 = smul.addr %s293, 128
        %s295 = scalar_lea.vmem [#allocation7], %s294
        %p296 = pneg %p95
        %p297 = pneg %p92
        %p298 = pneg %p116
        %p299 = pneg %p113
        %p300 = pneg %p137
        %p301 = pneg %p134
        %p302 = pneg %p158
        %p303 = pneg %p155
        %p304 = pneg %p184
        %p305 = pneg %p181
        %s306 = sand.u32 %s171, 1
        %s307 = scalar_lea.sflag [#allocation6], %s306
        %s308 = sand.u32 %s171, 1
        %s309 = smul.addr %s308, 256
        %s310 = scalar_lea.vmem [#allocation9], %s309
        %s312 = sld [smem:[#allocation3]]
        %v313 = vld [vmem:[%s277] sm:$0xf]
        %v314 = vld [vmem:[%s277 + $0x4] sm:$0xf]
        %v315 = vld [vmem:[%s277 + $0x8] sm:$0xf]
        %v316 = vld [vmem:[%s277 + $0xc] sm:$0xf]
        %v317 = vld [vmem:[%s277 + $0x10] sm:$0xf]
        %v318 = vld [vmem:[%s277 + $0x14] sm:$0xf]
        %v319 = vld [vmem:[%s277 + $0x18] sm:$0xf]
        %v320 = vld [vmem:[%s277 + $0x1c] sm:$0xf]
        %v321 = vld [vmem:[%s277 + $0x20] sm:$0xf]
        %v322 = vld [vmem:[%s277 + $0x24] sm:$0xf]
        %v323 = vld [vmem:[%s277 + $0x28] sm:$0xf]
        %v324 = vld [vmem:[%s277 + $0x2c] sm:$0xf]
        %v325 = vld [vmem:[%s277 + $0x30] sm:$0xf]
        %v326 = vld [vmem:[%s277 + $0x34] sm:$0xf]
        %v327 = vld [vmem:[%s277 + $0x38] sm:$0xf]
        %v328 = vld [vmem:[%s277 + $0x3c] sm:$0xf]
        %v329 = vld [vmem:[%s277 + $0x40] sm:$0xf]
        %v330 = vld [vmem:[%s277 + $0x44] sm:$0xf]
        %v331 = vld [vmem:[%s277 + $0x48] sm:$0xf]
        %v332 = vld [vmem:[%s277 + $0x4c] sm:$0xf]
        %v333 = vld [vmem:[%s277 + $0x50] sm:$0xf]
        %v334 = vld [vmem:[%s277 + $0x54] sm:$0xf]
        %v335 = vld [vmem:[%s277 + $0x58] sm:$0xf]
        %v336 = vld [vmem:[%s277 + $0x5c] sm:$0xf]
        %v337 = vld [vmem:[%s277 + $0x60] sm:$0xf]
        %v338 = vld [vmem:[%s277 + $0x64] sm:$0xf]
        %v339 = vld [vmem:[%s277 + $0x68] sm:$0xf]
        %v340 = vld [vmem:[%s277 + $0x6c] sm:$0xf]
        %v341 = vld [vmem:[%s277 + $0x70] sm:$0xf]
        %v342 = vld [vmem:[%s277 + $0x74] sm:$0xf]
        %v343 = vld [vmem:[%s277 + $0x78] sm:$0xf]
        %v344 = vld [vmem:[%s277 + $0x7c] sm:$0xf]
        %v345 = vld [vmem:[%s3] sm:$0xf]
        %v346 = vld [vmem:[%s3 + $0x4] sm:$0xf]
        %v347 = vld [vmem:[%s3 + $0x8] sm:$0xf]
        %v348 = vld [vmem:[%s3 + $0xc] sm:$0xf]
        %v349 = vld [vmem:[%s268] sm:$0xf]
        %v350 = vld [vmem:[%s268 + $0x4] sm:$0xf]
        %v351 = vld [vmem:[%s268 + $0x8] sm:$0xf]
        %v352 = vld [vmem:[%s268 + $0xc] sm:$0xf]
        %v353 = vld [vmem:[%s268 + $0x10] sm:$0xf]
        %v354 = vld [vmem:[%s268 + $0x14] sm:$0xf]
        %v355 = vld [vmem:[%s268 + $0x18] sm:$0xf]
        %v356 = vld [vmem:[%s268 + $0x1c] sm:$0xf]
        %v357 = vld [vmem:[%s268 + $0x20] sm:$0xf]
        %v358 = vld [vmem:[%s268 + $0x24] sm:$0xf]
        %v359 = vld [vmem:[%s268 + $0x28] sm:$0xf]
        %v360 = vld [vmem:[%s268 + $0x2c] sm:$0xf]
        %v361 = vld [vmem:[%s268 + $0x30] sm:$0xf]
        %v362 = vld [vmem:[%s268 + $0x34] sm:$0xf]
        %v363 = vld [vmem:[%s268 + $0x38] sm:$0xf]
        %v364 = vld [vmem:[%s268 + $0x3c] sm:$0xf]
        %v365 = vld [vmem:[%s268 + $0x40] sm:$0xf]
        %v366 = vld [vmem:[%s268 + $0x44] sm:$0xf]
        %v367 = vld [vmem:[%s268 + $0x48] sm:$0xf]
        %v368 = vld [vmem:[%s268 + $0x4c] sm:$0xf]
        %v369 = vld [vmem:[%s268 + $0x50] sm:$0xf]
        %v370 = vld [vmem:[%s268 + $0x54] sm:$0xf]
        %v371 = vld [vmem:[%s268 + $0x58] sm:$0xf]
        %v372 = vld [vmem:[%s268 + $0x5c] sm:$0xf]
        %v373 = vld [vmem:[%s268 + $0x60] sm:$0xf]
        %v374 = vld [vmem:[%s268 + $0x64] sm:$0xf]
        %v375 = vld [vmem:[%s268 + $0x68] sm:$0xf]
        %v376 = vld [vmem:[%s268 + $0x6c] sm:$0xf]
        %v377 = vld [vmem:[%s268 + $0x70] sm:$0xf]
        %v378 = vld [vmem:[%s268 + $0x74] sm:$0xf]
        %v379 = vld [vmem:[%s268 + $0x78] sm:$0xf]
        %v380 = vld [vmem:[%s268 + $0x7c] sm:$0xf]
        %v381 = vunpack.c.l.bf16 %v349
        %v382 = vunpack.c.l.bf16 %v350
        %v383 = vunpack.c.l.bf16 %v351
        %v384 = vunpack.c.l.bf16 %v352
        %v385 = vunpack.c.l.bf16 %v353
        %v386 = vunpack.c.l.bf16 %v354
        %v387 = vunpack.c.l.bf16 %v355
        %v388 = vunpack.c.l.bf16 %v356
        %v389 = vunpack.c.l.bf16 %v357
        %v390 = vunpack.c.l.bf16 %v358
        %v391 = vunpack.c.l.bf16 %v359
        %v392 = vunpack.c.l.bf16 %v360
        %v393 = vunpack.c.l.bf16 %v361
        %v394 = vunpack.c.l.bf16 %v362
        %v395 = vunpack.c.l.bf16 %v363
        %v396 = vunpack.c.l.bf16 %v364
        %v397 = vunpack.c.l.bf16 %v365
        %v398 = vunpack.c.l.bf16 %v366
        %v399 = vunpack.c.l.bf16 %v367
        %v400 = vunpack.c.l.bf16 %v368
        %v401 = vunpack.c.l.bf16 %v369
        %v402 = vunpack.c.l.bf16 %v370
        %v403 = vunpack.c.l.bf16 %v371
        %v404 = vunpack.c.l.bf16 %v372
        %v405 = vunpack.c.l.bf16 %v373
        %v406 = vunpack.c.l.bf16 %v374
        %v407 = vunpack.c.l.bf16 %v375
        %v408 = vunpack.c.l.bf16 %v376
        %v409 = vunpack.c.l.bf16 %v377
        %v410 = vunpack.c.l.bf16 %v378
        %v411 = vunpack.c.l.bf16 %v379
        %v412 = vunpack.c.l.bf16 %v380
        %v413 = vstv %s312
        %v414 = vmul.f32 %v413, %v381
        %v415 = vmul.f32 %v413, %v382
        %v416 = vmul.f32 %v413, %v383
        %v417 = vmul.f32 %v413, %v384
        %v418 = vmul.f32 %v413, %v385
        %v419 = vmul.f32 %v413, %v386
        %v420 = vmul.f32 %v413, %v387
        %v421 = vmul.f32 %v413, %v388
        %v422 = vmul.f32 %v413, %v389
        %v423 = vmul.f32 %v413, %v390
        %v424 = vmul.f32 %v413, %v391
        %v425 = vmul.f32 %v413, %v392
        %v426 = vmul.f32 %v413, %v393
        %v427 = vmul.f32 %v413, %v394
        %v428 = vmul.f32 %v413, %v395
        %v429 = vmul.f32 %v413, %v396
        %v430 = vmul.f32 %v413, %v397
        %v431 = vmul.f32 %v413, %v398
        %v432 = vmul.f32 %v413, %v399
        %v433 = vmul.f32 %v413, %v400
        %v434 = vmul.f32 %v413, %v401
        %v435 = vmul.f32 %v413, %v402
        %v436 = vmul.f32 %v413, %v403
        %v437 = vmul.f32 %v413, %v404
        %v438 = vmul.f32 %v413, %v405
        %v439 = vmul.f32 %v413, %v406
        %v440 = vmul.f32 %v413, %v407
        %v441 = vmul.f32 %v413, %v408
        %v442 = vmul.f32 %v413, %v409
        %v443 = vmul.f32 %v413, %v410
        %v444 = vmul.f32 %v413, %v411
        %v445 = vmul.f32 %v413, %v412
        %v478 = vunpack.c.l.b16 %v313
        %v479 = vunpack.c.l.b16 %v314
        %v480 = vunpack.c.l.b16 %v315
        %v481 = vunpack.c.l.b16 %v316
        %v482 = vunpack.c.l.b16 %v317
        %v483 = vunpack.c.l.b16 %v318
        %v484 = vunpack.c.l.b16 %v319
        %v485 = vunpack.c.l.b16 %v320
        %v486 = vunpack.c.l.b16 %v321
        %v487 = vunpack.c.l.b16 %v322
        %v488 = vunpack.c.l.b16 %v323
        %v489 = vunpack.c.l.b16 %v324
        %v490 = vunpack.c.l.b16 %v325
        %v491 = vunpack.c.l.b16 %v326
        %v492 = vunpack.c.l.b16 %v327
        %v493 = vunpack.c.l.b16 %v328
        %v494 = vunpack.c.l.b16 %v329
        %v495 = vunpack.c.l.b16 %v330
        %v496 = vunpack.c.l.b16 %v331
        %v497 = vunpack.c.l.b16 %v332
        %v498 = vunpack.c.l.b16 %v333
        %v499 = vunpack.c.l.b16 %v334
        %v500 = vunpack.c.l.b16 %v335
        %v501 = vunpack.c.l.b16 %v336
        %v502 = vunpack.c.l.b16 %v337
        %v503 = vunpack.c.l.b16 %v338
        %v504 = vunpack.c.l.b16 %v339
        %v505 = vunpack.c.l.b16 %v340
        %v506 = vunpack.c.l.b16 %v341
        %v507 = vunpack.c.l.b16 %v342
        %v508 = vunpack.c.l.b16 %v343
        %v509 = vunpack.c.l.b16 %v344
        %v510 = vpack.c.b16 %v479, %v478
        %v511 = vpack.c.b16 %v481, %v480
        %v512 = vpack.c.b16 %v483, %v482
        %v513 = vpack.c.b16 %v485, %v484
        %v514 = vpack.c.b16 %v487, %v486
        %v515 = vpack.c.b16 %v489, %v488
        %v516 = vpack.c.b16 %v491, %v490
        %v517 = vpack.c.b16 %v493, %v492
        %v518 = vpack.c.b16 %v495, %v494
        %v519 = vpack.c.b16 %v497, %v496
        %v520 = vpack.c.b16 %v499, %v498
        %v521 = vpack.c.b16 %v501, %v500
        %v522 = vpack.c.b16 %v503, %v502
        %v523 = vpack.c.b16 %v505, %v504
        %v524 = vpack.c.b16 %v507, %v506
        %v525 = vpack.c.b16 %v509, %v508
        %v530 = vunpack.c.l.b16 %v345
        %v531 = vunpack.c.l.b16 %v346
        %v532 = vunpack.c.l.b16 %v347
        %v533 = vunpack.c.l.b16 %v348
        %v534 = vpack.c.b16 %v531, %v530
        %v535 = vpack.c.b16 %v533, %v532
        %vm538 = vcmask 261120
        %v540 = vsel %vm538, %v510, 0
        %v543 = vsel %vm538, %v511, 0
        %v546 = vsel %vm538, %v512, 0
        %v549 = vsel %vm538, %v513, 0
        %v552 = vsel %vm538, %v514, 0
        %v555 = vsel %vm538, %v515, 0
        %v558 = vsel %vm538, %v516, 0
        %v561 = vsel %vm538, %v517, 0
        %v564 = vsel %vm538, %v518, 0
        %v567 = vsel %vm538, %v519, 0
        %v570 = vsel %vm538, %v520, 0
        %v573 = vsel %vm538, %v521, 0
        %v576 = vsel %vm538, %v522, 0
        %v579 = vsel %vm538, %v523, 0
        %v582 = vsel %vm538, %v524, 0
        %v585 = vsel %vm538, %v525, 0
        %587 = vmatprep.subr.bf16.mxu0 0
        %588 = vmatpush1.bf16.msra.mxu0 %v534
        %589 = vmatprep.subr.bf16.mxu0 0
        %590 = vmatpush1.bf16.msra.mxu0 %v535
        %591 = vmatprep.subr.bf16.mxu0 0
        %592 = vmatpush1.bf16.msra.mxu0 0
        %593 = vmatprep.subr.bf16.mxu0 0
        %594 = vmatpush1.bf16.msra.mxu0 0
        %595 = vmatprep.subr.bf16.mxu0 0
        %596 = vmatpush1.bf16.msra.mxu0 0
        %597 = vmatprep.subr.bf16.mxu0 0
        %598 = vmatpush1.bf16.msra.mxu0 0
        %599 = vmatprep.subr.bf16.mxu0 0
        %600 = vmatpush1.bf16.msra.mxu0 0
        %601 = vmatprep.subr.bf16.mxu0 0
        %602 = vmatpush1.bf16.msra.mxu0 0
        %603 = vmatprep.subr.bf16.mxu0 0
        %604 = vmatpush1.bf16.msra.mxu0 0
        %605 = vmatprep.subr.bf16.mxu0 0
        %606 = vmatpush1.bf16.msra.mxu0 0
        %607 = vmatprep.subr.bf16.mxu0 0
        %608 = vmatpush1.bf16.msra.mxu0 0
        %609 = vmatprep.subr.bf16.mxu0 0
        %610 = vmatpush1.bf16.msra.mxu0 0
        %611 = vmatprep.subr.bf16.mxu0 0
        %612 = vmatpush1.bf16.msra.mxu0 0
        %613 = vmatprep.subr.bf16.mxu0 0
        %614 = vmatpush1.bf16.msra.mxu0 0
        %615 = vmatprep.subr.bf16.mxu0 0
        %616 = vmatpush1.bf16.msra.mxu0 0
        %617 = vmatprep.subr.bf16.mxu0 0
        %618 = vmatpush1.bf16.msra.mxu0 0
        %619 = vmatprep.mubr.bf16.mxu0 0
        %620 = vmatmul.mubr.bf16.gmra.mrb[0].mxu0 %v540
        %v621 = vpop.f32.mrb[0].mxu0
        %v622 = vadd.f32 %v414, %v621
        %v623 = vpop.f32.mrb[0].mxu0
        %v624 = vpop.f32.mrb[0].mxu0
        %v625 = vadd.f32 %v415, %v624
        %v626 = vpop.f32.mrb[0].mxu0
        %627 = vmatprep.mubr.bf16.mxu0 0
        %628 = vmatmul.mubr.bf16.gmra.mrb[0].mxu0 %v543
        %v629 = vpop.f32.mrb[0].mxu0
        %v630 = vadd.f32 %v416, %v629
        %v631 = vpop.f32.mrb[0].mxu0
        %v632 = vpop.f32.mrb[0].mxu0
        %v633 = vadd.f32 %v417, %v632
        %v634 = vpop.f32.mrb[0].mxu0
        %635 = vmatprep.mubr.bf16.mxu0 0
        %636 = vmatmul.mubr.bf16.gmra.mrb[0].mxu0 %v546
        %v637 = vpop.f32.mrb[0].mxu0
        %v638 = vadd.f32 %v418, %v637
        %v639 = vpop.f32.mrb[0].mxu0
        %v640 = vpop.f32.mrb[0].mxu0
        %v641 = vadd.f32 %v419, %v640
        %v642 = vpop.f32.mrb[0].mxu0
        %643 = vmatprep.mubr.bf16.mxu0 0
        %644 = vmatmul.mubr.bf16.gmra.mrb[0].mxu0 %v549
        %v645 = vpop.f32.mrb[0].mxu0
        %v646 = vadd.f32 %v420, %v645
        %v647 = vpop.f32.mrb[0].mxu0
        %v648 = vpop.f32.mrb[0].mxu0
        %v649 = vadd.f32 %v421, %v648
        %v650 = vpop.f32.mrb[0].mxu0
        %651 = vmatprep.mubr.bf16.mxu0 0
        %652 = vmatmul.mubr.bf16.gmra.mrb[0].mxu0 %v552
        %v653 = vpop.f32.mrb[0].mxu0
        %v654 = vadd.f32 %v422, %v653
        %v655 = vpop.f32.mrb[0].mxu0
        %v656 = vpop.f32.mrb[0].mxu0
        %v657 = vadd.f32 %v423, %v656
        %v658 = vpop.f32.mrb[0].mxu0
        %659 = vmatprep.mubr.bf16.mxu0 0
        %660 = vmatmul.mubr.bf16.gmra.mrb[0].mxu0 %v555
        %v661 = vpop.f32.mrb[0].mxu0
        %v662 = vadd.f32 %v424, %v661
        %v663 = vpop.f32.mrb[0].mxu0
        %v664 = vpop.f32.mrb[0].mxu0
        %v665 = vadd.f32 %v425, %v664
        %v666 = vpop.f32.mrb[0].mxu0
        %667 = vmatprep.mubr.bf16.mxu0 0
        %668 = vmatmul.mubr.bf16.gmra.mrb[0].mxu0 %v558
        %v669 = vpop.f32.mrb[0].mxu0
        %v670 = vadd.f32 %v426, %v669
        %v671 = vpop.f32.mrb[0].mxu0
        %v672 = vpop.f32.mrb[0].mxu0
        %v673 = vadd.f32 %v427, %v672
        %v674 = vpop.f32.mrb[0].mxu0
        %675 = vmatprep.mubr.bf16.mxu0 0
        %676 = vmatmul.mubr.bf16.gmra.mrb[0].mxu0 %v561
        %v677 = vpop.f32.mrb[0].mxu0
        %v678 = vadd.f32 %v428, %v677
        %v679 = vpop.f32.mrb[0].mxu0
        %v680 = vpop.f32.mrb[0].mxu0
        %v681 = vadd.f32 %v429, %v680
        %v682 = vpop.f32.mrb[0].mxu0
        %683 = vmatprep.mubr.bf16.mxu0 0
        %684 = vmatmul.mubr.bf16.gmra.mrb[0].mxu0 %v564
        %v685 = vpop.f32.mrb[0].mxu0
        %v686 = vadd.f32 %v430, %v685
        %v687 = vpop.f32.mrb[0].mxu0
        %v688 = vpop.f32.mrb[0].mxu0
        %v689 = vadd.f32 %v431, %v688
        %v690 = vpop.f32.mrb[0].mxu0
        %691 = vmatprep.mubr.bf16.mxu0 0
        %692 = vmatmul.mubr.bf16.gmra.mrb[0].mxu0 %v567
        %v693 = vpop.f32.mrb[0].mxu0
        %v694 = vadd.f32 %v432, %v693
        %v695 = vpop.f32.mrb[0].mxu0
        %v696 = vpop.f32.mrb[0].mxu0
        %v697 = vadd.f32 %v433, %v696
        %v698 = vpop.f32.mrb[0].mxu0
        %699 = vmatprep.mubr.bf16.mxu0 0
        %700 = vmatmul.mubr.bf16.gmra.mrb[0].mxu0 %v570
        %v701 = vpop.f32.mrb[0].mxu0
        %v702 = vadd.f32 %v434, %v701
        %v703 = vpop.f32.mrb[0].mxu0
        %v704 = vpop.f32.mrb[0].mxu0
        %v705 = vadd.f32 %v435, %v704
        %v706 = vpop.f32.mrb[0].mxu0
        %707 = vmatprep.mubr.bf16.mxu0 0
        %708 = vmatmul.mubr.bf16.gmra.mrb[0].mxu0 %v573
        %v709 = vpop.f32.mrb[0].mxu0
        %v710 = vadd.f32 %v436, %v709
        %v711 = vpop.f32.mrb[0].mxu0
        %v712 = vpop.f32.mrb[0].mxu0
        %v713 = vadd.f32 %v437, %v712
        %v714 = vpop.f32.mrb[0].mxu0
        %715 = vmatprep.mubr.bf16.mxu0 0
        %716 = vmatmul.mubr.bf16.gmra.mrb[0].mxu0 %v576
        %v717 = vpop.f32.mrb[0].mxu0
        %v718 = vadd.f32 %v438, %v717
        %v719 = vpop.f32.mrb[0].mxu0
        %v720 = vpop.f32.mrb[0].mxu0
        %v721 = vadd.f32 %v439, %v720
        %v722 = vpop.f32.mrb[0].mxu0
        %723 = vmatprep.mubr.bf16.mxu0 0
        %724 = vmatmul.mubr.bf16.gmra.mrb[0].mxu0 %v579
        %v725 = vpop.f32.mrb[0].mxu0
        %v726 = vadd.f32 %v440, %v725
        %v727 = vpop.f32.mrb[0].mxu0
        %v728 = vpop.f32.mrb[0].mxu0
        %v729 = vadd.f32 %v441, %v728
        %v730 = vpop.f32.mrb[0].mxu0
        %731 = vmatprep.mubr.bf16.mxu0 0
        %732 = vmatmul.mubr.bf16.gmra.mrb[0].mxu0 %v582
        %v733 = vpop.f32.mrb[0].mxu0
        %v734 = vadd.f32 %v442, %v733
        %v735 = vpop.f32.mrb[0].mxu0
        %v736 = vpop.f32.mrb[0].mxu0
        %v737 = vadd.f32 %v443, %v736
        %v738 = vpop.f32.mrb[0].mxu0
        %739 = vmatprep.mubr.bf16.mxu0 0
        %740 = vmatmul.mubr.bf16.gmra.mrb[0].mxu0 %v585
        %v741 = vpop.f32.mrb[0].mxu0
        %v742 = vadd.f32 %v444, %v741
        %v743 = vpop.f32.mrb[0].mxu0
        %v744 = vpop.f32.mrb[0].mxu0
        %v745 = vadd.f32 %v445, %v744
        %v746 = vpop.f32.mrb[0].mxu0
        %747 = vdwg.mxu0
        %v748 = vpack.c.bf16 %v625, %v622
        %v749 = vpack.c.bf16 %v633, %v630
        %v750 = vpack.c.bf16 %v641, %v638
        %v751 = vpack.c.bf16 %v649, %v646
        %v752 = vpack.c.bf16 %v657, %v654
        %v753 = vpack.c.bf16 %v665, %v662
        %v754 = vpack.c.bf16 %v673, %v670
        %v755 = vpack.c.bf16 %v681, %v678
        %v756 = vpack.c.bf16 %v689, %v686
        %v757 = vpack.c.bf16 %v697, %v694
        %v758 = vpack.c.bf16 %v705, %v702
        %v759 = vpack.c.bf16 %v713, %v710
        %v760 = vpack.c.bf16 %v721, %v718
        %v761 = vpack.c.bf16 %v729, %v726
        %v762 = vpack.c.bf16 %v737, %v734
        %v763 = vpack.c.bf16 %v745, %v742
        %vm764 = vcmask 257024
        %765 = vst.msk [vmem:[#allocation2] sm:$0xf] %vm764, 0
        %766 = vst.msk [vmem:[#allocation2 + $0x4] sm:$0xf] %vm764, 0
        %vm767 = vcmask 253952
        %768 = vst.msk [vmem:[#allocation2 + $0x8] sm:$0x1] %vm767, 0
        %s769 = scalar_lea.vmem [#allocation2], 204
        %770 = vst.msk [vmem:[%s769] sm:$0xf] %vm764, 0
        %771 = vst.msk [vmem:[%s769 + $0x4] sm:$0xf] %vm764, 0
        %772 = vst.msk [vmem:[%s769 + $0x8] sm:$0x1] %vm767, 0
        %s773 = scalar_lea.vmem [#allocation2], 12
        %vm774 = vcmask 253952
        %vm775 = vsmask.f32 256
        %vm776 = vmand %vm774, %vm775
        %v777 = vld [vmem:[%s773] sm:$0x1]
        %v778 = vsel %vm776, 0, %v777
        %779 = vst [vmem:[%s773] sm:$0x1] %v778
        %v780 = vld [vmem:[%s773 + $0xc] sm:$0x1]
        %v781 = vsel %vm776, 0, %v780
        %782 = vst [vmem:[%s773 + $0xc] sm:$0x1] %v781
        %v783 = vld [vmem:[%s773 + $0x18] sm:$0x1]
        %v784 = vsel %vm776, 0, %v783
        %785 = vst [vmem:[%s773 + $0x18] sm:$0x1] %v784
        %v786 = vld [vmem:[%s773 + $0x24] sm:$0x1]
        %v787 = vsel %vm776, 0, %v786
        %788 = vst [vmem:[%s773 + $0x24] sm:$0x1] %v787
        %v789 = vld [vmem:[%s773 + $0x30] sm:$0x1]
        %v790 = vsel %vm776, 0, %v789
        %791 = vst [vmem:[%s773 + $0x30] sm:$0x1] %v790
        %v792 = vld [vmem:[%s773 + $0x3c] sm:$0x1]
        %v793 = vsel %vm776, 0, %v792
        %794 = vst [vmem:[%s773 + $0x3c] sm:$0x1] %v793
        %v795 = vld [vmem:[%s773 + $0x48] sm:$0x1]
        %v796 = vsel %vm776, 0, %v795
        %797 = vst [vmem:[%s773 + $0x48] sm:$0x1] %v796
        %v798 = vld [vmem:[%s773 + $0x54] sm:$0x1]
        %v799 = vsel %vm776, 0, %v798
        %800 = vst [vmem:[%s773 + $0x54] sm:$0x1] %v799
        %v801 = vld [vmem:[%s773 + $0x60] sm:$0x1]
        %v802 = vsel %vm776, 0, %v801
        %803 = vst [vmem:[%s773 + $0x60] sm:$0x1] %v802
        %v804 = vld [vmem:[%s773 + $0x6c] sm:$0x1]
        %v805 = vsel %vm776, 0, %v804
        %806 = vst [vmem:[%s773 + $0x6c] sm:$0x1] %v805
        %v807 = vld [vmem:[%s773 + $0x78] sm:$0x1]
        %v808 = vsel %vm776, 0, %v807
        %809 = vst [vmem:[%s773 + $0x78] sm:$0x1] %v808
        %v810 = vld [vmem:[%s773 + $0x84] sm:$0x1]
        %v811 = vsel %vm776, 0, %v810
        %812 = vst [vmem:[%s773 + $0x84] sm:$0x1] %v811
        %v813 = vld [vmem:[%s773 + $0x90] sm:$0x1]
        %v814 = vsel %vm776, 0, %v813
        %815 = vst [vmem:[%s773 + $0x90] sm:$0x1] %v814
        %v816 = vld [vmem:[%s773 + $0x9c] sm:$0x1]
        %v817 = vsel %vm776, 0, %v816
        %818 = vst [vmem:[%s773 + $0x9c] sm:$0x1] %v817
        %v819 = vld [vmem:[%s773 + $0xa8] sm:$0x1]
        %v820 = vsel %vm776, 0, %v819
        %821 = vst [vmem:[%s773 + $0xa8] sm:$0x1] %v820
        %v822 = vld [vmem:[%s773 + $0xb4] sm:$0x1]
        %v823 = vsel %vm776, 0, %v822
        %824 = vst [vmem:[%s773 + $0xb4] sm:$0x1] %v823
        %vm825 = vsmask.f32 7938
        %vm826 = vmand %vm774, %vm825
        %v827 = vld [vmem:[%s773 + $0x8] sm:$0x1]
        %v828 = vsel %vm826, 0, %v827
        %829 = vst [vmem:[%s773 + $0x8] sm:$0x1] %v828
        %v830 = vld [vmem:[%s773 + $0x14] sm:$0x1]
        %v831 = vsel %vm826, 0, %v830
        %832 = vst [vmem:[%s773 + $0x14] sm:$0x1] %v831
        %v833 = vld [vmem:[%s773 + $0x20] sm:$0x1]
        %v834 = vsel %vm826, 0, %v833
        %835 = vst [vmem:[%s773 + $0x20] sm:$0x1] %v834
        %v836 = vld [vmem:[%s773 + $0x2c] sm:$0x1]
        %v837 = vsel %vm826, 0, %v836
        %838 = vst [vmem:[%s773 + $0x2c] sm:$0x1] %v837
        %v839 = vld [vmem:[%s773 + $0x38] sm:$0x1]
        %v840 = vsel %vm826, 0, %v839
        %841 = vst [vmem:[%s773 + $0x38] sm:$0x1] %v840
        %v842 = vld [vmem:[%s773 + $0x44] sm:$0x1]
        %v843 = vsel %vm826, 0, %v842
        %844 = vst [vmem:[%s773 + $0x44] sm:$0x1] %v843
        %v845 = vld [vmem:[%s773 + $0x50] sm:$0x1]
        %v846 = vsel %vm826, 0, %v845
        %847 = vst [vmem:[%s773 + $0x50] sm:$0x1] %v846
        %v848 = vld [vmem:[%s773 + $0x5c] sm:$0x1]
        %v849 = vsel %vm826, 0, %v848
        %850 = vst [vmem:[%s773 + $0x5c] sm:$0x1] %v849
        %v851 = vld [vmem:[%s773 + $0x68] sm:$0x1]
        %v852 = vsel %vm826, 0, %v851
        %853 = vst [vmem:[%s773 + $0x68] sm:$0x1] %v852
        %v854 = vld [vmem:[%s773 + $0x74] sm:$0x1]
        %v855 = vsel %vm826, 0, %v854
        %856 = vst [vmem:[%s773 + $0x74] sm:$0x1] %v855
        %v857 = vld [vmem:[%s773 + $0x80] sm:$0x1]
        %v858 = vsel %vm826, 0, %v857
        %859 = vst [vmem:[%s773 + $0x80] sm:$0x1] %v858
        %v860 = vld [vmem:[%s773 + $0x8c] sm:$0x1]
        %v861 = vsel %vm826, 0, %v860
        %862 = vst [vmem:[%s773 + $0x8c] sm:$0x1] %v861
        %v863 = vld [vmem:[%s773 + $0x98] sm:$0x1]
        %v864 = vsel %vm826, 0, %v863
        %865 = vst [vmem:[%s773 + $0x98] sm:$0x1] %v864
        %v866 = vld [vmem:[%s773 + $0xa4] sm:$0x1]
        %v867 = vsel %vm826, 0, %v866
        %868 = vst [vmem:[%s773 + $0xa4] sm:$0x1] %v867
        %v869 = vld [vmem:[%s773 + $0xb0] sm:$0x1]
        %v870 = vsel %vm826, 0, %v869
        %871 = vst [vmem:[%s773 + $0xb0] sm:$0x1] %v870
        %v872 = vld [vmem:[%s773 + $0xbc] sm:$0x1]
        %v873 = vsel %vm826, 0, %v872
        %874 = vst [vmem:[%s773 + $0xbc] sm:$0x1] %v873
        %v891 = vunpack.c.l.b16 %v748
        %v892 = vunpack.c.h.b16 %v748
        %v893 = vunpack.c.l.b16 %v749
        %v894 = vunpack.c.h.b16 %v749
        %v895 = vunpack.c.l.b16 %v750
        %v896 = vunpack.c.h.b16 %v750
        %v897 = vunpack.c.l.b16 %v751
        %v898 = vunpack.c.h.b16 %v751
        %v899 = vunpack.c.l.b16 %v752
        %v900 = vunpack.c.h.b16 %v752
        %v901 = vunpack.c.l.b16 %v753
        %v902 = vunpack.c.h.b16 %v753
        %v903 = vunpack.c.l.b16 %v754
        %v904 = vunpack.c.h.b16 %v754
        %v905 = vunpack.c.l.b16 %v755
        %v906 = vunpack.c.h.b16 %v755
        %v907 = vunpack.c.l.b16 %v756
        %v908 = vunpack.c.h.b16 %v756
        %v909 = vunpack.c.l.b16 %v757
        %v910 = vunpack.c.h.b16 %v757
        %v911 = vunpack.c.l.b16 %v758
        %v912 = vunpack.c.h.b16 %v758
        %v913 = vunpack.c.l.b16 %v759
        %v914 = vunpack.c.h.b16 %v759
        %v915 = vunpack.c.l.b16 %v760
        %v916 = vunpack.c.h.b16 %v760
        %v917 = vunpack.c.l.b16 %v761
        %v918 = vunpack.c.h.b16 %v761
        %v919 = vunpack.c.l.b16 %v762
        %v920 = vunpack.c.h.b16 %v762
        %v921 = vunpack.c.l.b16 %v763
        %v922 = vunpack.c.h.b16 %v763
        %v923 = vpack.c.b16 %v891, %v891
        %v924 = vpack.c.b16 %v892, %v892
        %v925 = vpack.c.b16 %v893, %v893
        %v926 = vpack.c.b16 %v894, %v894
        %v927 = vpack.c.b16 %v895, %v895
        %v928 = vpack.c.b16 %v896, %v896
        %v929 = vpack.c.b16 %v897, %v897
        %v930 = vpack.c.b16 %v898, %v898
        %v931 = vpack.c.b16 %v899, %v899
        %v932 = vpack.c.b16 %v900, %v900
        %v933 = vpack.c.b16 %v901, %v901
        %v934 = vpack.c.b16 %v902, %v902
        %v935 = vpack.c.b16 %v903, %v903
        %v936 = vpack.c.b16 %v904, %v904
        %v937 = vpack.c.b16 %v905, %v905
        %v938 = vpack.c.b16 %v906, %v906
        %v939 = vpack.c.b16 %v907, %v907
        %v940 = vpack.c.b16 %v908, %v908
        %v941 = vpack.c.b16 %v909, %v909
        %v942 = vpack.c.b16 %v910, %v910
        %v943 = vpack.c.b16 %v911, %v911
        %v944 = vpack.c.b16 %v912, %v912
        %v945 = vpack.c.b16 %v913, %v913
        %v946 = vpack.c.b16 %v914, %v914
        %v947 = vpack.c.b16 %v915, %v915
        %v948 = vpack.c.b16 %v916, %v916
        %v949 = vpack.c.b16 %v917, %v917
        %v950 = vpack.c.b16 %v918, %v918
        %v951 = vpack.c.b16 %v919, %v919
        %v952 = vpack.c.b16 %v920, %v920
        %v953 = vpack.c.b16 %v921, %v921
        %v954 = vpack.c.b16 %v922, %v922
        %vm955 = vsmask.f32 4368
        %vm956 = vmor %vm775, %vm955
        %v958 = vshrl.u32 %v923, 16
        %v960 = vrot.slane %v958, 7
        %v961 = vshll.u32 %v923, 16
        %v963 = vor.u32 %v960, %v961
        %v964 = vrot.slane %v960, 4
        %v966 = vshrl.u32 %v924, 16
        %v968 = vrot.slane %v966, 7
        %v969 = vshll.u32 %v924, 16
        %v971 = vor.u32 %v968, %v969
        %v972 = vsel %vm956, %v964, %v971
        %v973 = vrot.slane %v968, 4
        %v975 = vshrl.u32 %v925, 16
        %v977 = vrot.slane %v975, 7
        %v978 = vshll.u32 %v925, 16
        %v980 = vor.u32 %v977, %v978
        %v981 = vrot.slane %v977, 4
        %v983 = vshrl.u32 %v926, 16
        %v985 = vrot.slane %v983, 7
        %v986 = vshll.u32 %v926, 16
        %v988 = vor.u32 %v985, %v986
        %v989 = vsel %vm956, %v981, %v988
        %v990 = vrot.slane %v985, 4
        %v992 = vshrl.u32 %v927, 16
        %v994 = vrot.slane %v992, 7
        %v995 = vshll.u32 %v927, 16
        %v997 = vor.u32 %v994, %v995
        %v998 = vrot.slane %v994, 4
        %v1000 = vshrl.u32 %v928, 16
        %v1002 = vrot.slane %v1000, 7
        %v1003 = vshll.u32 %v928, 16
        %v1005 = vor.u32 %v1002, %v1003
        %v1006 = vsel %vm956, %v998, %v1005
        %v1007 = vrot.slane %v1002, 4
        %v1009 = vshrl.u32 %v929, 16
        %v1011 = vrot.slane %v1009, 7
        %v1012 = vshll.u32 %v929, 16
        %v1014 = vor.u32 %v1011, %v1012
        %v1015 = vrot.slane %v1011, 4
        %v1017 = vshrl.u32 %v930, 16
        %v1019 = vrot.slane %v1017, 7
        %v1020 = vshll.u32 %v930, 16
        %v1022 = vor.u32 %v1019, %v1020
        %v1023 = vsel %vm956, %v1015, %v1022
        %v1024 = vrot.slane %v1019, 4
        %v1026 = vshrl.u32 %v931, 16
        %v1028 = vrot.slane %v1026, 7
        %v1029 = vshll.u32 %v931, 16
        %v1031 = vor.u32 %v1028, %v1029
        %v1032 = vrot.slane %v1028, 4
        %v1034 = vshrl.u32 %v932, 16
        %v1036 = vrot.slane %v1034, 7
        %v1037 = vshll.u32 %v932, 16
        %v1039 = vor.u32 %v1036, %v1037
        %v1040 = vsel %vm956, %v1032, %v1039
        %v1041 = vrot.slane %v1036, 4
        %v1043 = vshrl.u32 %v933, 16
        %v1045 = vrot.slane %v1043, 7
        %v1046 = vshll.u32 %v933, 16
        %v1048 = vor.u32 %v1045, %v1046
        %v1049 = vrot.slane %v1045, 4
        %v1051 = vshrl.u32 %v934, 16
        %v1053 = vrot.slane %v1051, 7
        %v1054 = vshll.u32 %v934, 16
        %v1056 = vor.u32 %v1053, %v1054
        %v1057 = vsel %vm956, %v1049, %v1056
        %v1058 = vrot.slane %v1053, 4
        %v1060 = vshrl.u32 %v935, 16
        %v1062 = vrot.slane %v1060, 7
        %v1063 = vshll.u32 %v935, 16
        %v1065 = vor.u32 %v1062, %v1063
        %v1066 = vrot.slane %v1062, 4
        %v1068 = vshrl.u32 %v936, 16
        %v1070 = vrot.slane %v1068, 7
        %v1071 = vshll.u32 %v936, 16
        %v1073 = vor.u32 %v1070, %v1071
        %v1074 = vsel %vm956, %v1066, %v1073
        %v1075 = vrot.slane %v1070, 4
        %v1077 = vshrl.u32 %v937, 16
        %v1079 = vrot.slane %v1077, 7
        %v1080 = vshll.u32 %v937, 16
        %v1082 = vor.u32 %v1079, %v1080
        %v1083 = vrot.slane %v1079, 4
        %v1085 = vshrl.u32 %v938, 16
        %v1087 = vrot.slane %v1085, 7
        %v1088 = vshll.u32 %v938, 16
        %v1090 = vor.u32 %v1087, %v1088
        %v1091 = vsel %vm956, %v1083, %v1090
        %v1092 = vrot.slane %v1087, 4
        %v1094 = vshrl.u32 %v939, 16
        %v1096 = vrot.slane %v1094, 7
        %v1097 = vshll.u32 %v939, 16
        %v1099 = vor.u32 %v1096, %v1097
        %v1100 = vrot.slane %v1096, 4
        %v1102 = vshrl.u32 %v940, 16
        %v1104 = vrot.slane %v1102, 7
        %v1105 = vshll.u32 %v940, 16
        %v1107 = vor.u32 %v1104, %v1105
        %v1108 = vsel %vm956, %v1100, %v1107
        %v1109 = vrot.slane %v1104, 4
        %v1111 = vshrl.u32 %v941, 16
        %v1113 = vrot.slane %v1111, 7
        %v1114 = vshll.u32 %v941, 16
        %v1116 = vor.u32 %v1113, %v1114
        %v1117 = vrot.slane %v1113, 4
        %v1119 = vshrl.u32 %v942, 16
        %v1121 = vrot.slane %v1119, 7
        %v1122 = vshll.u32 %v942, 16
        %v1124 = vor.u32 %v1121, %v1122
        %v1125 = vsel %vm956, %v1117, %v1124
        %v1126 = vrot.slane %v1121, 4
        %v1128 = vshrl.u32 %v943, 16
        %v1130 = vrot.slane %v1128, 7
        %v1131 = vshll.u32 %v943, 16
        %v1133 = vor.u32 %v1130, %v1131
        %v1134 = vrot.slane %v1130, 4
        %v1136 = vshrl.u32 %v944, 16
        %v1138 = vrot.slane %v1136, 7
        %v1139 = vshll.u32 %v944, 16
        %v1141 = vor.u32 %v1138, %v1139
        %v1142 = vsel %vm956, %v1134, %v1141
        %v1143 = vrot.slane %v1138, 4
        %v1145 = vshrl.u32 %v945, 16
        %v1147 = vrot.slane %v1145, 7
        %v1148 = vshll.u32 %v945, 16
        %v1150 = vor.u32 %v1147, %v1148
        %v1151 = vrot.slane %v1147, 4
        %v1153 = vshrl.u32 %v946, 16
        %v1155 = vrot.slane %v1153, 7
        %v1156 = vshll.u32 %v946, 16
        %v1158 = vor.u32 %v1155, %v1156
        %v1159 = vsel %vm956, %v1151, %v1158
        %v1160 = vrot.slane %v1155, 4
        %v1162 = vshrl.u32 %v947, 16
        %v1164 = vrot.slane %v1162, 7
        %v1165 = vshll.u32 %v947, 16
        %v1167 = vor.u32 %v1164, %v1165
        %v1168 = vrot.slane %v1164, 4
        %v1170 = vshrl.u32 %v948, 16
        %v1172 = vrot.slane %v1170, 7
        %v1173 = vshll.u32 %v948, 16
        %v1175 = vor.u32 %v1172, %v1173
        %v1176 = vsel %vm956, %v1168, %v1175
        %v1177 = vrot.slane %v1172, 4
        %v1179 = vshrl.u32 %v949, 16
        %v1181 = vrot.slane %v1179, 7
        %v1182 = vshll.u32 %v949, 16
        %v1184 = vor.u32 %v1181, %v1182
        %v1185 = vrot.slane %v1181, 4
        %v1187 = vshrl.u32 %v950, 16
        %v1189 = vrot.slane %v1187, 7
        %v1190 = vshll.u32 %v950, 16
        %v1192 = vor.u32 %v1189, %v1190
        %v1193 = vsel %vm956, %v1185, %v1192
        %v1194 = vrot.slane %v1189, 4
        %v1196 = vshrl.u32 %v951, 16
        %v1198 = vrot.slane %v1196, 7
        %v1199 = vshll.u32 %v951, 16
        %v1201 = vor.u32 %v1198, %v1199
        %v1202 = vrot.slane %v1198, 4
        %v1204 = vshrl.u32 %v952, 16
        %v1206 = vrot.slane %v1204, 7
        %v1207 = vshll.u32 %v952, 16
        %v1209 = vor.u32 %v1206, %v1207
        %v1210 = vsel %vm956, %v1202, %v1209
        %v1211 = vrot.slane %v1206, 4
        %v1213 = vshrl.u32 %v953, 16
        %v1215 = vrot.slane %v1213, 7
        %v1216 = vshll.u32 %v953, 16
        %v1218 = vor.u32 %v1215, %v1216
        %v1219 = vrot.slane %v1215, 4
        %v1221 = vshrl.u32 %v954, 16
        %v1223 = vrot.slane %v1221, 7
        %v1224 = vshll.u32 %v954, 16
        %v1226 = vor.u32 %v1223, %v1224
        %v1227 = vsel %vm956, %v1219, %v1226
        %v1228 = vrot.slane %v1223, 4
        %vm1277 = vcmask 257024
        %vm1278 = vmand %vm1277, %vm825
        %v1279 = vld [vmem:[%s773] sm:$0xf]
        %v1280 = vsel %vm1278, %v963, %v1279
        %1281 = vst [vmem:[%s773] sm:$0xf] %v1280
        %1282 = vst.msk [vmem:[%s773 + $0x4] sm:$0xf] %vm764, %v972
        %v1283 = vld [vmem:[%s773 + $0x8] sm:$0x1]
        %v1284 = vsel %vm776, %v973, %v1283
        %1285 = vst [vmem:[%s773 + $0x8] sm:$0x1] %v1284
        %v1286 = vld [vmem:[%s773 + $0xc] sm:$0xf]
        %v1287 = vsel %vm1278, %v980, %v1286
        %1288 = vst [vmem:[%s773 + $0xc] sm:$0xf] %v1287
        %1289 = vst.msk [vmem:[%s773 + $0x10] sm:$0xf] %vm764, %v989
        %v1290 = vld [vmem:[%s773 + $0x14] sm:$0x1]
        %v1291 = vsel %vm776, %v990, %v1290
        %1292 = vst [vmem:[%s773 + $0x14] sm:$0x1] %v1291
        %v1293 = vld [vmem:[%s773 + $0x18] sm:$0xf]
        %v1294 = vsel %vm1278, %v997, %v1293
        %1295 = vst [vmem:[%s773 + $0x18] sm:$0xf] %v1294
        %1296 = vst.msk [vmem:[%s773 + $0x1c] sm:$0xf] %vm764, %v1006
        %v1297 = vld [vmem:[%s773 + $0x20] sm:$0x1]
        %v1298 = vsel %vm776, %v1007, %v1297
        %1299 = vst [vmem:[%s773 + $0x20] sm:$0x1] %v1298
        %v1300 = vld [vmem:[%s773 + $0x24] sm:$0xf]
        %v1301 = vsel %vm1278, %v1014, %v1300
        %1302 = vst [vmem:[%s773 + $0x24] sm:$0xf] %v1301
        %1303 = vst.msk [vmem:[%s773 + $0x28] sm:$0xf] %vm764, %v1023
        %v1304 = vld [vmem:[%s773 + $0x2c] sm:$0x1]
        %v1305 = vsel %vm776, %v1024, %v1304
        %1306 = vst [vmem:[%s773 + $0x2c] sm:$0x1] %v1305
        %v1307 = vld [vmem:[%s773 + $0x30] sm:$0xf]
        %v1308 = vsel %vm1278, %v1031, %v1307
        %1309 = vst [vmem:[%s773 + $0x30] sm:$0xf] %v1308
        %1310 = vst.msk [vmem:[%s773 + $0x34] sm:$0xf] %vm764, %v1040
        %v1311 = vld [vmem:[%s773 + $0x38] sm:$0x1]
        %v1312 = vsel %vm776, %v1041, %v1311
        %1313 = vst [vmem:[%s773 + $0x38] sm:$0x1] %v1312
        %v1314 = vld [vmem:[%s773 + $0x3c] sm:$0xf]
        %v1315 = vsel %vm1278, %v1048, %v1314
        %1316 = vst [vmem:[%s773 + $0x3c] sm:$0xf] %v1315
        %1317 = vst.msk [vmem:[%s773 + $0x40] sm:$0xf] %vm764, %v1057
        %v1318 = vld [vmem:[%s773 + $0x44] sm:$0x1]
        %v1319 = vsel %vm776, %v1058, %v1318
        %1320 = vst [vmem:[%s773 + $0x44] sm:$0x1] %v1319
        %v1321 = vld [vmem:[%s773 + $0x48] sm:$0xf]
        %v1322 = vsel %vm1278, %v1065, %v1321
        %1323 = vst [vmem:[%s773 + $0x48] sm:$0xf] %v1322
        %1324 = vst.msk [vmem:[%s773 + $0x4c] sm:$0xf] %vm764, %v1074
        %v1325 = vld [vmem:[%s773 + $0x50] sm:$0x1]
        %v1326 = vsel %vm776, %v1075, %v1325
        %1327 = vst [vmem:[%s773 + $0x50] sm:$0x1] %v1326
        %v1328 = vld [vmem:[%s773 + $0x54] sm:$0xf]
        %v1329 = vsel %vm1278, %v1082, %v1328
        %1330 = vst [vmem:[%s773 + $0x54] sm:$0xf] %v1329
        %1331 = vst.msk [vmem:[%s773 + $0x58] sm:$0xf] %vm764, %v1091
        %v1332 = vld [vmem:[%s773 + $0x5c] sm:$0x1]
        %v1333 = vsel %vm776, %v1092, %v1332
        %1334 = vst [vmem:[%s773 + $0x5c] sm:$0x1] %v1333
        %v1335 = vld [vmem:[%s773 + $0x60] sm:$0xf]
        %v1336 = vsel %vm1278, %v1099, %v1335
        %1337 = vst [vmem:[%s773 + $0x60] sm:$0xf] %v1336
        %1338 = vst.msk [vmem:[%s773 + $0x64] sm:$0xf] %vm764, %v1108
        %v1339 = vld [vmem:[%s773 + $0x68] sm:$0x1]
        %v1340 = vsel %vm776, %v1109, %v1339
        %1341 = vst [vmem:[%s773 + $0x68] sm:$0x1] %v1340
        %v1342 = vld [vmem:[%s773 + $0x6c] sm:$0xf]
        %v1343 = vsel %vm1278, %v1116, %v1342
        %1344 = vst [vmem:[%s773 + $0x6c] sm:$0xf] %v1343
        %1345 = vst.msk [vmem:[%s773 + $0x70] sm:$0xf] %vm764, %v1125
        %v1346 = vld [vmem:[%s773 + $0x74] sm:$0x1]
        %v1347 = vsel %vm776, %v1126, %v1346
        %1348 = vst [vmem:[%s773 + $0x74] sm:$0x1] %v1347
        %v1349 = vld [vmem:[%s773 + $0x78] sm:$0xf]
        %v1350 = vsel %vm1278, %v1133, %v1349
        %1351 = vst [vmem:[%s773 + $0x78] sm:$0xf] %v1350
        %1352 = vst.msk [vmem:[%s773 + $0x7c] sm:$0xf] %vm764, %v1142
        %v1353 = vld [vmem:[%s773 + $0x80] sm:$0x1]
        %v1354 = vsel %vm776, %v1143, %v1353
        %1355 = vst [vmem:[%s773 + $0x80] sm:$0x1] %v1354
        %v1356 = vld [vmem:[%s773 + $0x84] sm:$0xf]
        %v1357 = vsel %vm1278, %v1150, %v1356
        %1358 = vst [vmem:[%s773 + $0x84] sm:$0xf] %v1357
        %1359 = vst.msk [vmem:[%s773 + $0x88] sm:$0xf] %vm764, %v1159
        %v1360 = vld [vmem:[%s773 + $0x8c] sm:$0x1]
        %v1361 = vsel %vm776, %v1160, %v1360
        %1362 = vst [vmem:[%s773 + $0x8c] sm:$0x1] %v1361
        %v1363 = vld [vmem:[%s773 + $0x90] sm:$0xf]
        %v1364 = vsel %vm1278, %v1167, %v1363
        %1365 = vst [vmem:[%s773 + $0x90] sm:$0xf] %v1364
        %1366 = vst.msk [vmem:[%s773 + $0x94] sm:$0xf] %vm764, %v1176
        %v1367 = vld [vmem:[%s773 + $0x98] sm:$0x1]
        %v1368 = vsel %vm776, %v1177, %v1367
        %1369 = vst [vmem:[%s773 + $0x98] sm:$0x1] %v1368
        %v1370 = vld [vmem:[%s773 + $0x9c] sm:$0xf]
        %v1371 = vsel %vm1278, %v1184, %v1370
        %1372 = vst [vmem:[%s773 + $0x9c] sm:$0xf] %v1371
        %1373 = vst.msk [vmem:[%s773 + $0xa0] sm:$0xf] %vm764, %v1193
        %v1374 = vld [vmem:[%s773 + $0xa4] sm:$0x1]
        %v1375 = vsel %vm776, %v1194, %v1374
        %1376 = vst [vmem:[%s773 + $0xa4] sm:$0x1] %v1375
        %v1377 = vld [vmem:[%s773 + $0xa8] sm:$0xf]
        %v1378 = vsel %vm1278, %v1201, %v1377
        %1379 = vst [vmem:[%s773 + $0xa8] sm:$0xf] %v1378
        %1380 = vst.msk [vmem:[%s773 + $0xac] sm:$0xf] %vm764, %v1210
        %v1381 = vld [vmem:[%s773 + $0xb0] sm:$0x1]
        %v1382 = vsel %vm776, %v1211, %v1381
        %1383 = vst [vmem:[%s773 + $0xb0] sm:$0x1] %v1382
        %v1384 = vld [vmem:[%s773 + $0xb4] sm:$0xf]
        %v1385 = vsel %vm1278, %v1218, %v1384
        %1386 = vst [vmem:[%s773 + $0xb4] sm:$0xf] %v1385
        %1387 = vst.msk [vmem:[%s773 + $0xb8] sm:$0xf] %vm764, %v1227
        %v1388 = vld [vmem:[%s773 + $0xbc] sm:$0x1]
        %v1389 = vsel %vm776, %v1228, %v1388
        %1390 = vst [vmem:[%s773 + $0xbc] sm:$0x1] %v1389
        %v1391 = vld [vmem:[#allocation2] sm:$0xf]
        %v1392 = vld [vmem:[#allocation2 + $0x4] sm:$0xf]
        %v1393 = vld [vmem:[#allocation2 + $0x8] sm:$0x1]
        %v1394 = vld [vmem:[#allocation2 + $0xc] sm:$0xf]
        %v1395 = vld [vmem:[#allocation2 + $0x10] sm:$0xf]
        %v1396 = vld [vmem:[#allocation2 + $0x14] sm:$0x1]
        %v1397 = vld [vmem:[#allocation2 + $0x18] sm:$0xf]
        %v1398 = vld [vmem:[#allocation2 + $0x1c] sm:$0xf]
        %v1399 = vld [vmem:[#allocation2 + $0x20] sm:$0x1]
        %v1400 = vld [vmem:[#allocation2 + $0x24] sm:$0xf]
        %v1401 = vld [vmem:[#allocation2 + $0x28] sm:$0xf]
        %v1402 = vld [vmem:[#allocation2 + $0x2c] sm:$0x1]
        %v1403 = vld [vmem:[#allocation2 + $0x30] sm:$0xf]
        %v1404 = vld [vmem:[#allocation2 + $0x34] sm:$0xf]
        %v1405 = vld [vmem:[#allocation2 + $0x38] sm:$0x1]
        %v1406 = vld [vmem:[#allocation2 + $0x3c] sm:$0xf]
        %v1407 = vld [vmem:[#allocation2 + $0x40] sm:$0xf]
        %v1408 = vld [vmem:[#allocation2 + $0x44] sm:$0x1]
        %v1409 = vld [vmem:[#allocation2 + $0x48] sm:$0xf]
        %v1410 = vld [vmem:[#allocation2 + $0x4c] sm:$0xf]
        %v1411 = vld [vmem:[#allocation2 + $0x50] sm:$0x1]
        %v1412 = vld [vmem:[#allocation2 + $0x54] sm:$0xf]
        %v1413 = vld [vmem:[#allocation2 + $0x58] sm:$0xf]
        %v1414 = vld [vmem:[#allocation2 + $0x5c] sm:$0x1]
        %v1415 = vld [vmem:[#allocation2 + $0x60] sm:$0xf]
        %v1416 = vld [vmem:[#allocation2 + $0x64] sm:$0xf]
        %v1417 = vld [vmem:[#allocation2 + $0x68] sm:$0x1]
        %v1418 = vld [vmem:[#allocation2 + $0x6c] sm:$0xf]
        %v1419 = vld [vmem:[#allocation2 + $0x70] sm:$0xf]
        %v1420 = vld [vmem:[#allocation2 + $0x74] sm:$0x1]
        %v1421 = vld [vmem:[#allocation2 + $0x78] sm:$0xf]
        %v1422 = vld [vmem:[#allocation2 + $0x7c] sm:$0xf]
        %v1423 = vld [vmem:[#allocation2 + $0x80] sm:$0x1]
        %v1424 = vld [vmem:[#allocation2 + $0x84] sm:$0xf]
        %v1425 = vld [vmem:[#allocation2 + $0x88] sm:$0xf]
        %v1426 = vld [vmem:[#allocation2 + $0x8c] sm:$0x1]
        %v1427 = vld [vmem:[#allocation2 + $0x90] sm:$0xf]
        %v1428 = vld [vmem:[#allocation2 + $0x94] sm:$0xf]
        %v1429 = vld [vmem:[#allocation2 + $0x98] sm:$0x1]
        %v1430 = vld [vmem:[#allocation2 + $0x9c] sm:$0xf]
        %v1431 = vld [vmem:[#allocation2 + $0xa0] sm:$0xf]
        %v1432 = vld [vmem:[#allocation2 + $0xa4] sm:$0x1]
        %v1433 = vld [vmem:[#allocation2 + $0xa8] sm:$0xf]
        %v1434 = vld [vmem:[#allocation2 + $0xac] sm:$0xf]
        %v1435 = vld [vmem:[#allocation2 + $0xb0] sm:$0x1]
        %v1436 = vld [vmem:[#allocation2 + $0xb4] sm:$0xf]
        %v1437 = vld [vmem:[#allocation2 + $0xb8] sm:$0xf]
        %v1438 = vld [vmem:[#allocation2 + $0xbc] sm:$0x1]
        %v1439 = vld [vmem:[#allocation2 + $0xc0] sm:$0xf]
        %v1440 = vld [vmem:[#allocation2 + $0xc4] sm:$0xf]
        %v1441 = vld [vmem:[#allocation2 + $0xc8] sm:$0x1]
        %v1442 = vld [vmem:[#allocation2 + $0xcc] sm:$0xf]
        %v1443 = vld [vmem:[#allocation2 + $0xd0] sm:$0xf]
        %v1444 = vld [vmem:[#allocation2 + $0xd4] sm:$0x1]
        %v1481 = vunpack.c.l.b16 %v1391
        %v1482 = vunpack.c.l.b16 %v1392
        %v1483 = vunpack.c.l.b16 %v1394
        %v1484 = vunpack.c.l.b16 %v1395
        %v1485 = vunpack.c.l.b16 %v1397
        %v1486 = vunpack.c.l.b16 %v1398
        %v1487 = vunpack.c.l.b16 %v1400
        %v1488 = vunpack.c.l.b16 %v1401
        %v1489 = vunpack.c.l.b16 %v1403
        %v1490 = vunpack.c.l.b16 %v1404
        %v1491 = vunpack.c.l.b16 %v1406
        %v1492 = vunpack.c.l.b16 %v1407
        %v1493 = vunpack.c.l.b16 %v1409
        %v1494 = vunpack.c.l.b16 %v1410
        %v1495 = vunpack.c.l.b16 %v1412
        %v1496 = vunpack.c.l.b16 %v1413
        %v1497 = vunpack.c.l.b16 %v1415
        %v1498 = vunpack.c.l.b16 %v1416
        %v1499 = vunpack.c.l.b16 %v1418
        %v1500 = vunpack.c.l.b16 %v1419
        %v1501 = vunpack.c.l.b16 %v1421
        %v1502 = vunpack.c.l.b16 %v1422
        %v1503 = vunpack.c.l.b16 %v1424
        %v1504 = vunpack.c.l.b16 %v1425
        %v1505 = vunpack.c.l.b16 %v1427
        %v1506 = vunpack.c.l.b16 %v1428
        %v1507 = vunpack.c.l.b16 %v1430
        %v1508 = vunpack.c.l.b16 %v1431
        %v1509 = vunpack.c.l.b16 %v1433
        %v1510 = vunpack.c.l.b16 %v1434
        %v1511 = vunpack.c.l.b16 %v1436
        %v1512 = vunpack.c.l.b16 %v1437
        %v1513 = vunpack.c.l.b16 %v1439
        %v1514 = vunpack.c.l.b16 %v1440
        %v1515 = vunpack.c.l.b16 %v1442
        %v1516 = vunpack.c.l.b16 %v1443
        %v1517 = vpack.c.b16 %v1482, %v1481
        %v1518 = vpack.c.b16 %v1484, %v1483
        %v1519 = vpack.c.b16 %v1486, %v1485
        %v1520 = vpack.c.b16 %v1488, %v1487
        %v1521 = vpack.c.b16 %v1490, %v1489
        %v1522 = vpack.c.b16 %v1492, %v1491
        %v1523 = vpack.c.b16 %v1494, %v1493
        %v1524 = vpack.c.b16 %v1496, %v1495
        %v1525 = vpack.c.b16 %v1498, %v1497
        %v1526 = vpack.c.b16 %v1500, %v1499
        %v1527 = vpack.c.b16 %v1502, %v1501
        %v1528 = vpack.c.b16 %v1504, %v1503
        %v1529 = vpack.c.b16 %v1506, %v1505
        %v1530 = vpack.c.b16 %v1508, %v1507
        %v1531 = vpack.c.b16 %v1510, %v1509
        %v1532 = vpack.c.b16 %v1512, %v1511
        %v1533 = vpack.c.b16 %v1514, %v1513
        %v1534 = vpack.c.b16 %v1516, %v1515
        %v1553 = vunpack.c.l.b16 %v1393
        %v1554 = vunpack.c.l.b16 %v1396
        %v1555 = vunpack.c.l.b16 %v1399
        %v1556 = vunpack.c.l.b16 %v1402
        %v1557 = vunpack.c.l.b16 %v1405
        %v1558 = vunpack.c.l.b16 %v1408
        %v1559 = vunpack.c.l.b16 %v1411
        %v1560 = vunpack.c.l.b16 %v1414
        %v1561 = vunpack.c.l.b16 %v1417
        %v1562 = vunpack.c.l.b16 %v1420
        %v1563 = vunpack.c.l.b16 %v1423
        %v1564 = vunpack.c.l.b16 %v1426
        %v1565 = vunpack.c.l.b16 %v1429
        %v1566 = vunpack.c.l.b16 %v1432
        %v1567 = vunpack.c.l.b16 %v1435
        %v1568 = vunpack.c.l.b16 %v1438
        %v1569 = vunpack.c.l.b16 %v1441
        %v1570 = vunpack.c.l.b16 %v1444
        %v1571 = vpack.c.b16 %v1553, %v1553
        %v1572 = vpack.c.b16 %v1554, %v1554
        %v1573 = vpack.c.b16 %v1555, %v1555
        %v1574 = vpack.c.b16 %v1556, %v1556
        %v1575 = vpack.c.b16 %v1557, %v1557
        %v1576 = vpack.c.b16 %v1558, %v1558
        %v1577 = vpack.c.b16 %v1559, %v1559
        %v1578 = vpack.c.b16 %v1560, %v1560
        %v1579 = vpack.c.b16 %v1561, %v1561
        %v1580 = vpack.c.b16 %v1562, %v1562
        %v1581 = vpack.c.b16 %v1563, %v1563
        %v1582 = vpack.c.b16 %v1564, %v1564
        %v1583 = vpack.c.b16 %v1565, %v1565
        %v1584 = vpack.c.b16 %v1566, %v1566
        %v1585 = vpack.c.b16 %v1567, %v1567
        %v1586 = vpack.c.b16 %v1568, %v1568
        %v1587 = vpack.c.b16 %v1569, %v1569
        %v1588 = vpack.c.b16 %v1570, %v1570
        %vm1589 = vsmask.f32 7424
        %v1591 = vshrl.u32 %v1517, 16
        %v1593 = vshll.u32 %v1517, 16
        %v1595 = vrot.slane %v1593, 1
        %v1596 = vor.u32 %v1591, %v1595
        %v1598 = vshll.u32 %v1571, 16
        %v1600 = vrot.slane %v1598, 1
        %v1601 = vsel %vm1589, %v1596, %v1600
        %v1603 = vshrl.u32 %v1518, 16
        %v1605 = vshll.u32 %v1518, 16
        %v1607 = vrot.slane %v1605, 1
        %v1608 = vor.u32 %v1603, %v1607
        %v1610 = vshll.u32 %v1572, 16
        %v1612 = vrot.slane %v1610, 1
        %v1613 = vsel %vm1589, %v1608, %v1612
        %v1615 = vshrl.u32 %v1519, 16
        %v1617 = vshll.u32 %v1519, 16
        %v1619 = vrot.slane %v1617, 1
        %v1620 = vor.u32 %v1615, %v1619
        %v1622 = vshll.u32 %v1573, 16
        %v1624 = vrot.slane %v1622, 1
        %v1625 = vsel %vm1589, %v1620, %v1624
        %v1627 = vshrl.u32 %v1520, 16
        %v1629 = vshll.u32 %v1520, 16
        %v1631 = vrot.slane %v1629, 1
        %v1632 = vor.u32 %v1627, %v1631
        %v1634 = vshll.u32 %v1574, 16
        %v1636 = vrot.slane %v1634, 1
        %v1637 = vsel %vm1589, %v1632, %v1636
        %v1639 = vshrl.u32 %v1521, 16
        %v1641 = vshll.u32 %v1521, 16
        %v1643 = vrot.slane %v1641, 1
        %v1644 = vor.u32 %v1639, %v1643
        %v1646 = vshll.u32 %v1575, 16
        %v1648 = vrot.slane %v1646, 1
        %v1649 = vsel %vm1589, %v1644, %v1648
        %v1651 = vshrl.u32 %v1522, 16
        %v1653 = vshll.u32 %v1522, 16
        %v1655 = vrot.slane %v1653, 1
        %v1656 = vor.u32 %v1651, %v1655
        %v1658 = vshll.u32 %v1576, 16
        %v1660 = vrot.slane %v1658, 1
        %v1661 = vsel %vm1589, %v1656, %v1660
        %v1663 = vshrl.u32 %v1523, 16
        %v1665 = vshll.u32 %v1523, 16
        %v1667 = vrot.slane %v1665, 1
        %v1668 = vor.u32 %v1663, %v1667
        %v1670 = vshll.u32 %v1577, 16
        %v1672 = vrot.slane %v1670, 1
        %v1673 = vsel %vm1589, %v1668, %v1672
        %v1675 = vshrl.u32 %v1524, 16
        %v1677 = vshll.u32 %v1524, 16
        %v1679 = vrot.slane %v1677, 1
        %v1680 = vor.u32 %v1675, %v1679
        %v1682 = vshll.u32 %v1578, 16
        %v1684 = vrot.slane %v1682, 1
        %v1685 = vsel %vm1589, %v1680, %v1684
        %v1687 = vshrl.u32 %v1525, 16
        %v1689 = vshll.u32 %v1525, 16
        %v1691 = vrot.slane %v1689, 1
        %v1692 = vor.u32 %v1687, %v1691
        %v1694 = vshll.u32 %v1579, 16
        %v1696 = vrot.slane %v1694, 1
        %v1697 = vsel %vm1589, %v1692, %v1696
        %v1699 = vshrl.u32 %v1526, 16
        %v1701 = vshll.u32 %v1526, 16
        %v1703 = vrot.slane %v1701, 1
        %v1704 = vor.u32 %v1699, %v1703
        %v1706 = vshll.u32 %v1580, 16
        %v1708 = vrot.slane %v1706, 1
        %v1709 = vsel %vm1589, %v1704, %v1708
        %v1711 = vshrl.u32 %v1527, 16
        %v1713 = vshll.u32 %v1527, 16
        %v1715 = vrot.slane %v1713, 1
        %v1716 = vor.u32 %v1711, %v1715
        %v1718 = vshll.u32 %v1581, 16
        %v1720 = vrot.slane %v1718, 1
        %v1721 = vsel %vm1589, %v1716, %v1720
        %v1723 = vshrl.u32 %v1528, 16
        %v1725 = vshll.u32 %v1528, 16
        %v1727 = vrot.slane %v1725, 1
        %v1728 = vor.u32 %v1723, %v1727
        %v1730 = vshll.u32 %v1582, 16
        %v1732 = vrot.slane %v1730, 1
        %v1733 = vsel %vm1589, %v1728, %v1732
        %v1735 = vshrl.u32 %v1529, 16
        %v1737 = vshll.u32 %v1529, 16
        %v1739 = vrot.slane %v1737, 1
        %v1740 = vor.u32 %v1735, %v1739
        %v1742 = vshll.u32 %v1583, 16
        %v1744 = vrot.slane %v1742, 1
        %v1745 = vsel %vm1589, %v1740, %v1744
        %v1747 = vshrl.u32 %v1530, 16
        %v1749 = vshll.u32 %v1530, 16
        %v1751 = vrot.slane %v1749, 1
        %v1752 = vor.u32 %v1747, %v1751
        %v1754 = vshll.u32 %v1584, 16
        %v1756 = vrot.slane %v1754, 1
        %v1757 = vsel %vm1589, %v1752, %v1756
        %v1759 = vshrl.u32 %v1531, 16
        %v1761 = vshll.u32 %v1531, 16
        %v1763 = vrot.slane %v1761, 1
        %v1764 = vor.u32 %v1759, %v1763
        %v1766 = vshll.u32 %v1585, 16
        %v1768 = vrot.slane %v1766, 1
        %v1769 = vsel %vm1589, %v1764, %v1768
        %v1771 = vshrl.u32 %v1532, 16
        %v1773 = vshll.u32 %v1532, 16
        %v1775 = vrot.slane %v1773, 1
        %v1776 = vor.u32 %v1771, %v1775
        %v1778 = vshll.u32 %v1586, 16
        %v1780 = vrot.slane %v1778, 1
        %v1781 = vsel %vm1589, %v1776, %v1780
        %v1783 = vshrl.u32 %v1533, 16
        %v1785 = vshll.u32 %v1533, 16
        %v1787 = vrot.slane %v1785, 1
        %v1788 = vor.u32 %v1783, %v1787
        %v1790 = vshll.u32 %v1587, 16
        %v1792 = vrot.slane %v1790, 1
        %v1793 = vsel %vm1589, %v1788, %v1792
        %v1795 = vshrl.u32 %v1534, 16
        %v1797 = vshll.u32 %v1534, 16
        %v1799 = vrot.slane %v1797, 1
        %v1800 = vor.u32 %v1795, %v1799
        %v1802 = vshll.u32 %v1588, 16
        %v1804 = vrot.slane %v1802, 1
        %v1805 = vsel %vm1589, %v1800, %v1804
        %1806 = vrot.lane.b32.xlu0 %v1601, 32
        %v1807 = vpop.permute.xlu0 %1806
        %1808 = vrot.lane.b32.xlu0 %v1613, 32
        %v1809 = vpop.permute.xlu0 %1808
        %1810 = vrot.lane.b32.xlu0 %v1625, 32
        %v1811 = vpop.permute.xlu0 %1810
        %1812 = vrot.lane.b32.xlu0 %v1637, 32
        %v1813 = vpop.permute.xlu0 %1812
        %1814 = vrot.lane.b32.xlu0 %v1649, 32
        %v1815 = vpop.permute.xlu0 %1814
        %1816 = vrot.lane.b32.xlu0 %v1661, 32
        %v1817 = vpop.permute.xlu0 %1816
        %1818 = vrot.lane.b32.xlu0 %v1673, 32
        %v1819 = vpop.permute.xlu0 %1818
        %1820 = vrot.lane.b32.xlu0 %v1685, 32
        %v1821 = vpop.permute.xlu0 %1820
        %1822 = vrot.lane.b32.xlu0 %v1697, 32
        %v1823 = vpop.permute.xlu0 %1822
        %1824 = vrot.lane.b32.xlu0 %v1709, 32
        %v1825 = vpop.permute.xlu0 %1824
        %1826 = vrot.lane.b32.xlu0 %v1721, 32
        %v1827 = vpop.permute.xlu0 %1826
        %1828 = vrot.lane.b32.xlu0 %v1733, 32
        %v1829 = vpop.permute.xlu0 %1828
        %1830 = vrot.lane.b32.xlu0 %v1745, 32
        %v1831 = vpop.permute.xlu0 %1830
        %1832 = vrot.lane.b32.xlu0 %v1757, 32
        %v1833 = vpop.permute.xlu0 %1832
        %1834 = vrot.lane.b32.xlu0 %v1769, 32
        %v1835 = vpop.permute.xlu0 %1834
        %1836 = vrot.lane.b32.xlu0 %v1781, 32
        %v1837 = vpop.permute.xlu0 %1836
        %1838 = vrot.lane.b32.xlu0 %v1793, 32
        %v1839 = vpop.permute.xlu0 %1838
        %1840 = vrot.lane.b32.xlu0 %v1805, 32
        %v1841 = vpop.permute.xlu0 %1840
        %vm1842 = vcmask 1046528
        %v1843 = vrot.slane %v1517, 1
        %v1844 = vrot.slane %v1571, 1
        %v1845 = vsel %vm1842, %v1843, %v1844
        %v1846 = vrot.slane %v1518, 1
        %v1847 = vrot.slane %v1572, 1
        %v1848 = vsel %vm1842, %v1846, %v1847
        %v1849 = vrot.slane %v1519, 1
        %v1850 = vrot.slane %v1573, 1
        %v1851 = vsel %vm1842, %v1849, %v1850
        %v1852 = vrot.slane %v1520, 1
        %v1853 = vrot.slane %v1574, 1
        %v1854 = vsel %vm1842, %v1852, %v1853
        %v1855 = vrot.slane %v1521, 1
        %v1856 = vrot.slane %v1575, 1
        %v1857 = vsel %vm1842, %v1855, %v1856
        %v1858 = vrot.slane %v1522, 1
        %v1859 = vrot.slane %v1576, 1
        %v1860 = vsel %vm1842, %v1858, %v1859
        %v1861 = vrot.slane %v1523, 1
        %v1862 = vrot.slane %v1577, 1
        %v1863 = vsel %vm1842, %v1861, %v1862
        %v1864 = vrot.slane %v1524, 1
        %v1865 = vrot.slane %v1578, 1
        %v1866 = vsel %vm1842, %v1864, %v1865
        %v1867 = vrot.slane %v1525, 1
        %v1868 = vrot.slane %v1579, 1
        %v1869 = vsel %vm1842, %v1867, %v1868
        %v1870 = vrot.slane %v1526, 1
        %v1871 = vrot.slane %v1580, 1
        %v1872 = vsel %vm1842, %v1870, %v1871
        %v1873 = vrot.slane %v1527, 1
        %v1874 = vrot.slane %v1581, 1
        %v1875 = vsel %vm1842, %v1873, %v1874
        %v1876 = vrot.slane %v1528, 1
        %v1877 = vrot.slane %v1582, 1
        %v1878 = vsel %vm1842, %v1876, %v1877
        %v1879 = vrot.slane %v1529, 1
        %v1880 = vrot.slane %v1583, 1
        %v1881 = vsel %vm1842, %v1879, %v1880
        %v1882 = vrot.slane %v1530, 1
        %v1883 = vrot.slane %v1584, 1
        %v1884 = vsel %vm1842, %v1882, %v1883
        %v1885 = vrot.slane %v1531, 1
        %v1886 = vrot.slane %v1585, 1
        %v1887 = vsel %vm1842, %v1885, %v1886
        %v1888 = vrot.slane %v1532, 1
        %v1889 = vrot.slane %v1586, 1
        %v1890 = vsel %vm1842, %v1888, %v1889
        %v1891 = vrot.slane %v1533, 1
        %v1892 = vrot.slane %v1587, 1
        %v1893 = vsel %vm1842, %v1891, %v1892
        %v1894 = vrot.slane %v1534, 1
        %v1895 = vrot.slane %v1588, 1
        %v1896 = vsel %vm1842, %v1894, %v1895
        %1897 = vrot.lane.b32.xlu0 %v1845, 64
        %v1898 = vpop.permute.xlu0 %1897
        %1899 = vrot.lane.b32.xlu0 %v1848, 64
        %v1900 = vpop.permute.xlu0 %1899
        %1901 = vrot.lane.b32.xlu0 %v1851, 64
        %v1902 = vpop.permute.xlu0 %1901
        %1903 = vrot.lane.b32.xlu0 %v1854, 64
        %v1904 = vpop.permute.xlu0 %1903
        %1905 = vrot.lane.b32.xlu0 %v1857, 64
        %v1906 = vpop.permute.xlu0 %1905
        %1907 = vrot.lane.b32.xlu0 %v1860, 64
        %v1908 = vpop.permute.xlu0 %1907
        %1909 = vrot.lane.b32.xlu0 %v1863, 64
        %v1910 = vpop.permute.xlu0 %1909
        %1911 = vrot.lane.b32.xlu0 %v1866, 64
        %v1912 = vpop.permute.xlu0 %1911
        %1913 = vrot.lane.b32.xlu0 %v1869, 64
        %v1914 = vpop.permute.xlu0 %1913
        %1915 = vrot.lane.b32.xlu0 %v1872, 64
        %v1916 = vpop.permute.xlu0 %1915
        %1917 = vrot.lane.b32.xlu0 %v1875, 64
        %v1918 = vpop.permute.xlu0 %1917
        %1919 = vrot.lane.b32.xlu0 %v1878, 64
        %v1920 = vpop.permute.xlu0 %1919
        %1921 = vrot.lane.b32.xlu0 %v1881, 64
        %v1922 = vpop.permute.xlu0 %1921
        %1923 = vrot.lane.b32.xlu0 %v1884, 64
        %v1924 = vpop.permute.xlu0 %1923
        %1925 = vrot.lane.b32.xlu0 %v1887, 64
        %v1926 = vpop.permute.xlu0 %1925
        %1927 = vrot.lane.b32.xlu0 %v1890, 64
        %v1928 = vpop.permute.xlu0 %1927
        %1929 = vrot.lane.b32.xlu0 %v1893, 64
        %v1930 = vpop.permute.xlu0 %1929
        %1931 = vrot.lane.b32.xlu0 %v1896, 64
        %v1932 = vpop.permute.xlu0 %1931
        %v1934 = vsel %vm538, %v1517, %v1807
        %v1936 = vsel %vm538, %v1518, %v1809
        %v1938 = vsel %vm538, %v1519, %v1811
        %v1940 = vsel %vm538, %v1520, %v1813
        %v1942 = vsel %vm538, %v1521, %v1815
        %v1944 = vsel %vm538, %v1522, %v1817
        %v1946 = vsel %vm538, %v1523, %v1819
        %v1948 = vsel %vm538, %v1524, %v1821
        %v1950 = vsel %vm538, %v1525, %v1823
        %v1952 = vsel %vm538, %v1526, %v1825
        %v1954 = vsel %vm538, %v1527, %v1827
        %v1956 = vsel %vm538, %v1528, %v1829
        %v1958 = vsel %vm538, %v1529, %v1831
        %v1960 = vsel %vm538, %v1530, %v1833
        %v1962 = vsel %vm538, %v1531, %v1835
        %v1964 = vsel %vm538, %v1532, %v1837
        %v1966 = vsel %vm538, %v1533, %v1839
        %v1968 = vsel %vm538, %v1534, %v1841
        %vm1969 = vcmask 523264
        %v1971 = vsel %vm1969, %v1934, %v1898
        %v1973 = vsel %vm1969, %v1936, %v1900
        %v1975 = vsel %vm1969, %v1938, %v1902
        %v1977 = vsel %vm1969, %v1940, %v1904
        %v1979 = vsel %vm1969, %v1942, %v1906
        %v1981 = vsel %vm1969, %v1944, %v1908
        %v1983 = vsel %vm1969, %v1946, %v1910
        %v1985 = vsel %vm1969, %v1948, %v1912
        %v1987 = vsel %vm1969, %v1950, %v1914
        %v1989 = vsel %vm1969, %v1952, %v1916
        %v1991 = vsel %vm1969, %v1954, %v1918
        %v1993 = vsel %vm1969, %v1956, %v1920
        %v1995 = vsel %vm1969, %v1958, %v1922
        %v1997 = vsel %vm1969, %v1960, %v1924
        %v1999 = vsel %vm1969, %v1962, %v1926
        %v2001 = vsel %vm1969, %v1964, %v1928
        %v2003 = vsel %vm1969, %v1966, %v1930
        %v2005 = vsel %vm1969, %v1968, %v1932
        %v2006 = vld [vmem:[%s4] sm:$0xf]
        %v2007 = vld [vmem:[%s4 + $0x4] sm:$0xf]
        %v2008 = vld [vmem:[%s4 + $0x8] sm:$0xf]
        %v2009 = vld [vmem:[%s4 + $0xc] sm:$0xf]
        %v2010 = vld [vmem:[%s4 + $0x10] sm:$0xf]
        %v2011 = vld [vmem:[%s4 + $0x14] sm:$0xf]
        %v2012 = vld [vmem:[%s4 + $0x18] sm:$0xf]
        %v2013 = vld [vmem:[%s4 + $0x1c] sm:$0xf]
        %v2014 = vld [vmem:[%s4 + $0x20] sm:$0xf]
        %v2015 = vld [vmem:[%s4 + $0x24] sm:$0xf]
        %v2016 = vld [vmem:[%s4 + $0x28] sm:$0xf]
        %v2017 = vld [vmem:[%s4 + $0x2c] sm:$0xf]
        %s2018 = scalar_lea.vmem %s4, 48
        %v2019 = vld [vmem:[%s2018] sm:$0xf]
        %v2020 = vld [vmem:[%s2018 + $0x4] sm:$0xf]
        %v2021 = vld [vmem:[%s2018 + $0x8] sm:$0xf]
        %v2022 = vld [vmem:[%s2018 + $0xc] sm:$0xf]
        %v2023 = vld [vmem:[%s2018 + $0x10] sm:$0xf]
        %v2024 = vld [vmem:[%s2018 + $0x14] sm:$0xf]
        %v2025 = vld [vmem:[%s2018 + $0x18] sm:$0xf]
        %v2026 = vld [vmem:[%s2018 + $0x1c] sm:$0xf]
        %v2027 = vld [vmem:[%s2018 + $0x20] sm:$0xf]
        %v2028 = vld [vmem:[%s2018 + $0x24] sm:$0xf]
        %v2029 = vld [vmem:[%s2018 + $0x28] sm:$0xf]
        %v2030 = vld [vmem:[%s2018 + $0x2c] sm:$0xf]
        %v2043 = vunpack.c.l.b16 %v2019
        %v2044 = vunpack.c.l.b16 %v2020
        %v2045 = vunpack.c.l.b16 %v2021
        %v2046 = vunpack.c.l.b16 %v2022
        %v2047 = vunpack.c.l.b16 %v2023
        %v2048 = vunpack.c.l.b16 %v2024
        %v2049 = vunpack.c.l.b16 %v2025
        %v2050 = vunpack.c.l.b16 %v2026
        %v2051 = vunpack.c.l.b16 %v2027
        %v2052 = vunpack.c.l.b16 %v2028
        %v2053 = vunpack.c.l.b16 %v2029
        %v2054 = vunpack.c.l.b16 %v2030
        %v2055 = vpack.c.b16 %v2044, %v2043
        %v2056 = vpack.c.b16 %v2046, %v2045
        %v2057 = vpack.c.b16 %v2048, %v2047
        %v2058 = vpack.c.b16 %v2050, %v2049
        %v2059 = vpack.c.b16 %v2052, %v2051
        %v2060 = vpack.c.b16 %v2054, %v2053
        %vm2067 = vcmask 785408
        %v2068 = vsel %vm2067, %v1973, 0
        %v2070 = vsel %vm2067, %v1975, 0
        %v2072 = vsel %vm2067, %v1977, 0
        %v2074 = vsel %vm2067, %v1979, 0
        %v2076 = vsel %vm2067, %v1981, 0
        %v2078 = vsel %vm2067, %v1983, 0
        %v2080 = vsel %vm2067, %v1985, 0
        %v2082 = vsel %vm2067, %v1987, 0
        %v2084 = vsel %vm2067, %v1989, 0
        %v2086 = vsel %vm2067, %v1991, 0
        %v2088 = vsel %vm2067, %v1993, 0
        %v2090 = vsel %vm2067, %v1995, 0
        %v2092 = vsel %vm2067, %v1997, 0
        %v2094 = vsel %vm2067, %v1999, 0
        %v2096 = vsel %vm2067, %v2001, 0
        %v2098 = vsel %vm2067, %v2003, 0
        %2100 = vmatprep.subr.bf16.mxu0 0
        %2101 = vmatpush1.bf16.msra.mxu0 %v2055
        %2102 = vmatprep.subr.bf16.mxu0 0
        %2103 = vmatpush1.bf16.msra.mxu0 %v2056
        %2104 = vmatprep.subr.bf16.mxu0 0
        %2105 = vmatpush1.bf16.msra.mxu0 %v2057
        %2106 = vmatprep.subr.bf16.mxu0 0
        %2107 = vmatpush1.bf16.msra.mxu0 %v2058
        %2108 = vmatprep.subr.bf16.mxu0 0
        %2109 = vmatpush1.bf16.msra.mxu0 %v2059
        %2110 = vmatprep.subr.bf16.mxu0 0
        %2111 = vmatpush1.bf16.msra.mxu0 %v2060
        %2112 = vmatprep.subr.bf16.mxu0 0
        %2113 = vmatpush1.bf16.msra.mxu0 0
        %2114 = vmatprep.subr.bf16.mxu0 0
        %2115 = vmatpush1.bf16.msra.mxu0 0
        %2116 = vmatprep.subr.bf16.mxu0 0
        %2117 = vmatpush1.bf16.msra.mxu0 0
        %2118 = vmatprep.subr.bf16.mxu0 0
        %2119 = vmatpush1.bf16.msra.mxu0 0
        %2120 = vmatprep.subr.bf16.mxu0 0
        %2121 = vmatpush1.bf16.msra.mxu0 0
        %2122 = vmatprep.subr.bf16.mxu0 0
        %2123 = vmatpush1.bf16.msra.mxu0 0
        %2124 = vmatprep.subr.bf16.mxu0 0
        %2125 = vmatpush1.bf16.msra.mxu0 0
        %2126 = vmatprep.subr.bf16.mxu0 0
        %2127 = vmatpush1.bf16.msra.mxu0 0
        %2128 = vmatprep.subr.bf16.mxu0 0
        %2129 = vmatpush1.bf16.msra.mxu0 0
        %2130 = vmatprep.subr.bf16.mxu0 0
        %2131 = vmatpush1.bf16.msra.mxu0 0
        %2132 = vmatprep.mubr.bf16.mxu0 0
        %2133 = vmatmul.mubr.bf16.gmra.mrb[0].mxu0 %v2068
        %v2134 = vpop.f32.mrb[0].mxu0
        %v2135 = vadd.f32 0.0, %v2134
        %v2136 = vpop.f32.mrb[0].mxu0
        %v2137 = vpop.f32.mrb[0].mxu0
        %v2138 = vadd.f32 0.0, %v2137
        %v2139 = vpop.f32.mrb[0].mxu0
        %2140 = vmatprep.mubr.bf16.mxu0 0
        %2141 = vmatmul.mubr.bf16.gmra.mrb[0].mxu0 %v2070
        %v2142 = vpop.f32.mrb[0].mxu0
        %v2143 = vadd.f32 0.0, %v2142
        %v2144 = vpop.f32.mrb[0].mxu0
        %v2145 = vpop.f32.mrb[0].mxu0
        %v2146 = vadd.f32 0.0, %v2145
        %v2147 = vpop.f32.mrb[0].mxu0
        %2148 = vmatprep.mubr.bf16.mxu0 0
        %2149 = vmatmul.mubr.bf16.gmra.mrb[0].mxu0 %v2072
        %v2150 = vpop.f32.mrb[0].mxu0
        %v2151 = vadd.f32 0.0, %v2150
        %v2152 = vpop.f32.mrb[0].mxu0
        %v2153 = vpop.f32.mrb[0].mxu0
        %v2154 = vadd.f32 0.0, %v2153
        %v2155 = vpop.f32.mrb[0].mxu0
        %2156 = vmatprep.mubr.bf16.mxu0 0
        %2157 = vmatmul.mubr.bf16.gmra.mrb[0].mxu0 %v2074
        %v2158 = vpop.f32.mrb[0].mxu0
        %v2159 = vadd.f32 0.0, %v2158
        %v2160 = vpop.f32.mrb[0].mxu0
        %v2161 = vpop.f32.mrb[0].mxu0
        %v2162 = vadd.f32 0.0, %v2161
        %v2163 = vpop.f32.mrb[0].mxu0
        %2164 = vmatprep.mubr.bf16.mxu0 0
        %2165 = vmatmul.mubr.bf16.gmra.mrb[0].mxu0 %v2076
        %v2166 = vpop.f32.mrb[0].mxu0
        %v2167 = vadd.f32 0.0, %v2166
        %v2168 = vpop.f32.mrb[0].mxu0
        %v2169 = vpop.f32.mrb[0].mxu0
        %v2170 = vadd.f32 0.0, %v2169
        %v2171 = vpop.f32.mrb[0].mxu0
        %2172 = vmatprep.mubr.bf16.mxu0 0
        %2173 = vmatmul.mubr.bf16.gmra.mrb[0].mxu0 %v2078
        %v2174 = vpop.f32.mrb[0].mxu0
        %v2175 = vadd.f32 0.0, %v2174
        %v2176 = vpop.f32.mrb[0].mxu0
        %v2177 = vpop.f32.mrb[0].mxu0
        %v2178 = vadd.f32 0.0, %v2177
        %v2179 = vpop.f32.mrb[0].mxu0
        %2180 = vmatprep.mubr.bf16.mxu0 0
        %2181 = vmatmul.mubr.bf16.gmra.mrb[0].mxu0 %v2080
        %v2182 = vpop.f32.mrb[0].mxu0
        %v2183 = vadd.f32 0.0, %v2182
        %v2184 = vpop.f32.mrb[0].mxu0
        %v2185 = vpop.f32.mrb[0].mxu0
        %v2186 = vadd.f32 0.0, %v2185
        %v2187 = vpop.f32.mrb[0].mxu0
        %2188 = vmatprep.mubr.bf16.mxu0 0
        %2189 = vmatmul.mubr.bf16.gmra.mrb[0].mxu0 %v2082
        %v2190 = vpop.f32.mrb[0].mxu0
        %v2191 = vadd.f32 0.0, %v2190
        %v2192 = vpop.f32.mrb[0].mxu0
        %v2193 = vpop.f32.mrb[0].mxu0
        %v2194 = vadd.f32 0.0, %v2193
        %v2195 = vpop.f32.mrb[0].mxu0
        %2196 = vmatprep.mubr.bf16.mxu0 0
        %2197 = vmatmul.mubr.bf16.gmra.mrb[0].mxu0 %v2084
        %v2198 = vpop.f32.mrb[0].mxu0
        %v2199 = vadd.f32 0.0, %v2198
        %v2200 = vpop.f32.mrb[0].mxu0
        %v2201 = vpop.f32.mrb[0].mxu0
        %v2202 = vadd.f32 0.0, %v2201
        %v2203 = vpop.f32.mrb[0].mxu0
        %2204 = vmatprep.mubr.bf16.mxu0 0
        %2205 = vmatmul.mubr.bf16.gmra.mrb[0].mxu0 %v2086
        %v2206 = vpop.f32.mrb[0].mxu0
        %v2207 = vadd.f32 0.0, %v2206
        %v2208 = vpop.f32.mrb[0].mxu0
        %v2209 = vpop.f32.mrb[0].mxu0
        %v2210 = vadd.f32 0.0, %v2209
        %v2211 = vpop.f32.mrb[0].mxu0
        %2212 = vmatprep.mubr.bf16.mxu0 0
        %2213 = vmatmul.mubr.bf16.gmra.mrb[0].mxu0 %v2088
        %v2214 = vpop.f32.mrb[0].mxu0
        %v2215 = vadd.f32 0.0, %v2214
        %v2216 = vpop.f32.mrb[0].mxu0
        %v2217 = vpop.f32.mrb[0].mxu0
        %v2218 = vadd.f32 0.0, %v2217
        %v2219 = vpop.f32.mrb[0].mxu0
        %2220 = vmatprep.mubr.bf16.mxu0 0
        %2221 = vmatmul.mubr.bf16.gmra.mrb[0].mxu0 %v2090
        %v2222 = vpop.f32.mrb[0].mxu0
        %v2223 = vadd.f32 0.0, %v2222
        %v2224 = vpop.f32.mrb[0].mxu0
        %v2225 = vpop.f32.mrb[0].mxu0
        %v2226 = vadd.f32 0.0, %v2225
        %v2227 = vpop.f32.mrb[0].mxu0
        %2228 = vmatprep.mubr.bf16.mxu0 0
        %2229 = vmatmul.mubr.bf16.gmra.mrb[0].mxu0 %v2092
        %v2230 = vpop.f32.mrb[0].mxu0
        %v2231 = vadd.f32 0.0, %v2230
        %v2232 = vpop.f32.mrb[0].mxu0
        %v2233 = vpop.f32.mrb[0].mxu0
        %v2234 = vadd.f32 0.0, %v2233
        %v2235 = vpop.f32.mrb[0].mxu0
        %2236 = vmatprep.mubr.bf16.mxu0 0
        %2237 = vmatmul.mubr.bf16.gmra.mrb[0].mxu0 %v2094
        %v2238 = vpop.f32.mrb[0].mxu0
        %v2239 = vadd.f32 0.0, %v2238
        %v2240 = vpop.f32.mrb[0].mxu0
        %v2241 = vpop.f32.mrb[0].mxu0
        %v2242 = vadd.f32 0.0, %v2241
        %v2243 = vpop.f32.mrb[0].mxu0
        %2244 = vmatprep.mubr.bf16.mxu0 0
        %2245 = vmatmul.mubr.bf16.gmra.mrb[0].mxu0 %v2096
        %v2246 = vpop.f32.mrb[0].mxu0
        %v2247 = vadd.f32 0.0, %v2246
        %v2248 = vpop.f32.mrb[0].mxu0
        %v2249 = vpop.f32.mrb[0].mxu0
        %v2250 = vadd.f32 0.0, %v2249
        %v2251 = vpop.f32.mrb[0].mxu0
        %2252 = vmatprep.mubr.bf16.mxu0 0
        %2253 = vmatmul.mubr.bf16.gmra.mrb[0].mxu0 %v2098
        %v2254 = vpop.f32.mrb[0].mxu0
        %v2255 = vadd.f32 0.0, %v2254
        %v2256 = vpop.f32.mrb[0].mxu0
        %v2257 = vpop.f32.mrb[0].mxu0
        %v2258 = vadd.f32 0.0, %v2257
        %v2259 = vpop.f32.mrb[0].mxu0
        %2260 = vdwg.mxu0
        %v2273 = vunpack.c.l.b16 %v2006
        %v2274 = vunpack.c.l.b16 %v2007
        %v2275 = vunpack.c.l.b16 %v2008
        %v2276 = vunpack.c.l.b16 %v2009
        %v2277 = vunpack.c.l.b16 %v2010
        %v2278 = vunpack.c.l.b16 %v2011
        %v2279 = vunpack.c.l.b16 %v2012
        %v2280 = vunpack.c.l.b16 %v2013
        %v2281 = vunpack.c.l.b16 %v2014
        %v2282 = vunpack.c.l.b16 %v2015
        %v2283 = vunpack.c.l.b16 %v2016
        %v2284 = vunpack.c.l.b16 %v2017
        %v2285 = vpack.c.b16 %v2274, %v2273
        %v2286 = vpack.c.b16 %v2276, %v2275
        %v2287 = vpack.c.b16 %v2278, %v2277
        %v2288 = vpack.c.b16 %v2280, %v2279
        %v2289 = vpack.c.b16 %v2282, %v2281
        %v2290 = vpack.c.b16 %v2284, %v2283
        %v2297 = vsel %vm2067, %v1971, 0
        %2299 = vmatprep.subr.bf16.mxu0 0
        %2300 = vmatpush1.bf16.msra.mxu0 %v2285
        %2301 = vmatprep.subr.bf16.mxu0 0
        %2302 = vmatpush1.bf16.msra.mxu0 %v2286
        %2303 = vmatprep.subr.bf16.mxu0 0
        %2304 = vmatpush1.bf16.msra.mxu0 %v2287
        %2305 = vmatprep.subr.bf16.mxu0 0
        %2306 = vmatpush1.bf16.msra.mxu0 %v2288
        %2307 = vmatprep.subr.bf16.mxu0 0
        %2308 = vmatpush1.bf16.msra.mxu0 %v2289
        %2309 = vmatprep.subr.bf16.mxu0 0
        %2310 = vmatpush1.bf16.msra.mxu0 %v2290
        %2311 = vmatprep.subr.bf16.mxu0 0
        %2312 = vmatpush1.bf16.msra.mxu0 0
        %2313 = vmatprep.subr.bf16.mxu0 0
        %2314 = vmatpush1.bf16.msra.mxu0 0
        %2315 = vmatprep.subr.bf16.mxu0 0
        %2316 = vmatpush1.bf16.msra.mxu0 0
        %2317 = vmatprep.subr.bf16.mxu0 0
        %2318 = vmatpush1.bf16.msra.mxu0 0
        %2319 = vmatprep.subr.bf16.mxu0 0
        %2320 = vmatpush1.bf16.msra.mxu0 0
        %2321 = vmatprep.subr.bf16.mxu0 0
        %2322 = vmatpush1.bf16.msra.mxu0 0
        %2323 = vmatprep.subr.bf16.mxu0 0
        %2324 = vmatpush1.bf16.msra.mxu0 0
        %2325 = vmatprep.subr.bf16.mxu0 0
        %2326 = vmatpush1.bf16.msra.mxu0 0
        %2327 = vmatprep.subr.bf16.mxu0 0
        %2328 = vmatpush1.bf16.msra.mxu0 0
        %2329 = vmatprep.subr.bf16.mxu0 0
        %2330 = vmatpush1.bf16.msra.mxu0 0
        %2331 = vmatprep.mubr.bf16.mxu0 0
        %2332 = vmatmul.mubr.bf16.gmra.mrb[0].mxu0 %v2297
        %v2333 = vpop.f32.mrb[0].mxu0
        %v2334 = vadd.f32 %v2135, %v2333
        %v2335 = vpop.f32.mrb[0].mxu0
        %v2336 = vpop.f32.mrb[0].mxu0
        %v2337 = vadd.f32 %v2138, %v2336
        %v2338 = vpop.f32.mrb[0].mxu0
        %2339 = vmatprep.mubr.bf16.mxu0 0
        %2340 = vmatmul.mubr.bf16.gmra.mrb[0].mxu0 %v2068
        %v2341 = vpop.f32.mrb[0].mxu0
        %v2342 = vadd.f32 %v2143, %v2341
        %v2343 = vpop.f32.mrb[0].mxu0
        %v2344 = vpop.f32.mrb[0].mxu0
        %v2345 = vadd.f32 %v2146, %v2344
        %v2346 = vpop.f32.mrb[0].mxu0
        %2347 = vmatprep.mubr.bf16.mxu0 0
        %2348 = vmatmul.mubr.bf16.gmra.mrb[0].mxu0 %v2070
        %v2349 = vpop.f32.mrb[0].mxu0
        %v2350 = vadd.f32 %v2151, %v2349
        %v2351 = vpop.f32.mrb[0].mxu0
        %v2352 = vpop.f32.mrb[0].mxu0
        %v2353 = vadd.f32 %v2154, %v2352
        %v2354 = vpop.f32.mrb[0].mxu0
        %2355 = vmatprep.mubr.bf16.mxu0 0
        %2356 = vmatmul.mubr.bf16.gmra.mrb[0].mxu0 %v2072
        %v2357 = vpop.f32.mrb[0].mxu0
        %v2358 = vadd.f32 %v2159, %v2357
        %v2359 = vpop.f32.mrb[0].mxu0
        %v2360 = vpop.f32.mrb[0].mxu0
        %v2361 = vadd.f32 %v2162, %v2360
        %v2362 = vpop.f32.mrb[0].mxu0
        %2363 = vmatprep.mubr.bf16.mxu0 0
        %2364 = vmatmul.mubr.bf16.gmra.mrb[0].mxu0 %v2074
        %v2365 = vpop.f32.mrb[0].mxu0
        %v2366 = vadd.f32 %v2167, %v2365
        %v2367 = vpop.f32.mrb[0].mxu0
        %v2368 = vpop.f32.mrb[0].mxu0
        %v2369 = vadd.f32 %v2170, %v2368
        %v2370 = vpop.f32.mrb[0].mxu0
        %2371 = vmatprep.mubr.bf16.mxu0 0
        %2372 = vmatmul.mubr.bf16.gmra.mrb[0].mxu0 %v2076
        %v2373 = vpop.f32.mrb[0].mxu0
        %v2374 = vadd.f32 %v2175, %v2373
        %v2375 = vpop.f32.mrb[0].mxu0
        %v2376 = vpop.f32.mrb[0].mxu0
        %v2377 = vadd.f32 %v2178, %v2376
        %v2378 = vpop.f32.mrb[0].mxu0
        %2379 = vmatprep.mubr.bf16.mxu0 0
        %2380 = vmatmul.mubr.bf16.gmra.mrb[0].mxu0 %v2078
        %v2381 = vpop.f32.mrb[0].mxu0
        %v2382 = vadd.f32 %v2183, %v2381
        %v2383 = vpop.f32.mrb[0].mxu0
        %v2384 = vpop.f32.mrb[0].mxu0
        %v2385 = vadd.f32 %v2186, %v2384
        %v2386 = vpop.f32.mrb[0].mxu0
        %2387 = vmatprep.mubr.bf16.mxu0 0
        %2388 = vmatmul.mubr.bf16.gmra.mrb[0].mxu0 %v2080
        %v2389 = vpop.f32.mrb[0].mxu0
        %v2390 = vadd.f32 %v2191, %v2389
        %v2391 = vpop.f32.mrb[0].mxu0
        %v2392 = vpop.f32.mrb[0].mxu0
        %v2393 = vadd.f32 %v2194, %v2392
        %v2394 = vpop.f32.mrb[0].mxu0
        %2395 = vmatprep.mubr.bf16.mxu0 0
        %2396 = vmatmul.mubr.bf16.gmra.mrb[0].mxu0 %v2082
        %v2397 = vpop.f32.mrb[0].mxu0
        %v2398 = vadd.f32 %v2199, %v2397
        %v2399 = vpop.f32.mrb[0].mxu0
        %v2400 = vpop.f32.mrb[0].mxu0
        %v2401 = vadd.f32 %v2202, %v2400
        %v2402 = vpop.f32.mrb[0].mxu0
        %2403 = vmatprep.mubr.bf16.mxu0 0
        %2404 = vmatmul.mubr.bf16.gmra.mrb[0].mxu0 %v2084
        %v2405 = vpop.f32.mrb[0].mxu0
        %v2406 = vadd.f32 %v2207, %v2405
        %v2407 = vpop.f32.mrb[0].mxu0
        %v2408 = vpop.f32.mrb[0].mxu0
        %v2409 = vadd.f32 %v2210, %v2408
        %v2410 = vpop.f32.mrb[0].mxu0
        %2411 = vmatprep.mubr.bf16.mxu0 0
        %2412 = vmatmul.mubr.bf16.gmra.mrb[0].mxu0 %v2086
        %v2413 = vpop.f32.mrb[0].mxu0
        %v2414 = vadd.f32 %v2215, %v2413
        %v2415 = vpop.f32.mrb[0].mxu0
        %v2416 = vpop.f32.mrb[0].mxu0
        %v2417 = vadd.f32 %v2218, %v2416
        %v2418 = vpop.f32.mrb[0].mxu0
        %2419 = vmatprep.mubr.bf16.mxu0 0
        %2420 = vmatmul.mubr.bf16.gmra.mrb[0].mxu0 %v2088
        %v2421 = vpop.f32.mrb[0].mxu0
        %v2422 = vadd.f32 %v2223, %v2421
        %v2423 = vpop.f32.mrb[0].mxu0
        %v2424 = vpop.f32.mrb[0].mxu0
        %v2425 = vadd.f32 %v2226, %v2424
        %v2426 = vpop.f32.mrb[0].mxu0
        %2427 = vmatprep.mubr.bf16.mxu0 0
        %2428 = vmatmul.mubr.bf16.gmra.mrb[0].mxu0 %v2090
        %v2429 = vpop.f32.mrb[0].mxu0
        %v2430 = vadd.f32 %v2231, %v2429
        %v2431 = vpop.f32.mrb[0].mxu0
        %v2432 = vpop.f32.mrb[0].mxu0
        %v2433 = vadd.f32 %v2234, %v2432
        %v2434 = vpop.f32.mrb[0].mxu0
        %2435 = vmatprep.mubr.bf16.mxu0 0
        %2436 = vmatmul.mubr.bf16.gmra.mrb[0].mxu0 %v2092
        %v2437 = vpop.f32.mrb[0].mxu0
        %v2438 = vadd.f32 %v2239, %v2437
        %v2439 = vpop.f32.mrb[0].mxu0
        %v2440 = vpop.f32.mrb[0].mxu0
        %v2441 = vadd.f32 %v2242, %v2440
        %v2442 = vpop.f32.mrb[0].mxu0
        %2443 = vmatprep.mubr.bf16.mxu0 0
        %2444 = vmatmul.mubr.bf16.gmra.mrb[0].mxu0 %v2094
        %v2445 = vpop.f32.mrb[0].mxu0
        %v2446 = vadd.f32 %v2247, %v2445
        %v2447 = vpop.f32.mrb[0].mxu0
        %v2448 = vpop.f32.mrb[0].mxu0
        %v2449 = vadd.f32 %v2250, %v2448
        %v2450 = vpop.f32.mrb[0].mxu0
        %2451 = vmatprep.mubr.bf16.mxu0 0
        %2452 = vmatmul.mubr.bf16.gmra.mrb[0].mxu0 %v2096
        %v2453 = vpop.f32.mrb[0].mxu0
        %v2454 = vadd.f32 %v2255, %v2453
        %v2455 = vpop.f32.mrb[0].mxu0
        %v2456 = vpop.f32.mrb[0].mxu0
        %v2457 = vadd.f32 %v2258, %v2456
        %v2458 = vpop.f32.mrb[0].mxu0
        %2459 = vdwg.mxu0
        %s2460 = scalar_lea.vmem %s4, 96
        %v2461 = vld [vmem:[%s2460] sm:$0xf]
        %v2462 = vld [vmem:[%s2460 + $0x4] sm:$0xf]
        %v2463 = vld [vmem:[%s2460 + $0x8] sm:$0xf]
        %v2464 = vld [vmem:[%s2460 + $0xc] sm:$0xf]
        %v2465 = vld [vmem:[%s2460 + $0x10] sm:$0xf]
        %v2466 = vld [vmem:[%s2460 + $0x14] sm:$0xf]
        %v2467 = vld [vmem:[%s2460 + $0x18] sm:$0xf]
        %v2468 = vld [vmem:[%s2460 + $0x1c] sm:$0xf]
        %v2469 = vld [vmem:[%s2460 + $0x20] sm:$0xf]
        %v2470 = vld [vmem:[%s2460 + $0x24] sm:$0xf]
        %v2471 = vld [vmem:[%s2460 + $0x28] sm:$0xf]
        %v2472 = vld [vmem:[%s2460 + $0x2c] sm:$0xf]
        %v2485 = vunpack.c.l.b16 %v2461
        %v2486 = vunpack.c.l.b16 %v2462
        %v2487 = vunpack.c.l.b16 %v2463
        %v2488 = vunpack.c.l.b16 %v2464
        %v2489 = vunpack.c.l.b16 %v2465
        %v2490 = vunpack.c.l.b16 %v2466
        %v2491 = vunpack.c.l.b16 %v2467
        %v2492 = vunpack.c.l.b16 %v2468
        %v2493 = vunpack.c.l.b16 %v2469
        %v2494 = vunpack.c.l.b16 %v2470
        %v2495 = vunpack.c.l.b16 %v2471
        %v2496 = vunpack.c.l.b16 %v2472
        %v2497 = vpack.c.b16 %v2486, %v2485
        %v2498 = vpack.c.b16 %v2488, %v2487
        %v2499 = vpack.c.b16 %v2490, %v2489
        %v2500 = vpack.c.b16 %v2492, %v2491
        %v2501 = vpack.c.b16 %v2494, %v2493
        %v2502 = vpack.c.b16 %v2496, %v2495
        %v2509 = vsel %vm2067, %v2005, 0
        %2511 = vmatprep.subr.bf16.mxu0 0
        %2512 = vmatpush1.bf16.msra.mxu0 %v2497
        %2513 = vmatprep.subr.bf16.mxu0 0
        %2514 = vmatpush1.bf16.msra.mxu0 %v2498
        %2515 = vmatprep.subr.bf16.mxu0 0
        %2516 = vmatpush1.bf16.msra.mxu0 %v2499
        %2517 = vmatprep.subr.bf16.mxu0 0
        %2518 = vmatpush1.bf16.msra.mxu0 %v2500
        %2519 = vmatprep.subr.bf16.mxu0 0
        %2520 = vmatpush1.bf16.msra.mxu0 %v2501
        %2521 = vmatprep.subr.bf16.mxu0 0
        %2522 = vmatpush1.bf16.msra.mxu0 %v2502
        %2523 = vmatprep.subr.bf16.mxu0 0
        %2524 = vmatpush1.bf16.msra.mxu0 0
        %2525 = vmatprep.subr.bf16.mxu0 0
        %2526 = vmatpush1.bf16.msra.mxu0 0
        %2527 = vmatprep.subr.bf16.mxu0 0
        %2528 = vmatpush1.bf16.msra.mxu0 0
        %2529 = vmatprep.subr.bf16.mxu0 0
        %2530 = vmatpush1.bf16.msra.mxu0 0
        %2531 = vmatprep.subr.bf16.mxu0 0
        %2532 = vmatpush1.bf16.msra.mxu0 0
        %2533 = vmatprep.subr.bf16.mxu0 0
        %2534 = vmatpush1.bf16.msra.mxu0 0
        %2535 = vmatprep.subr.bf16.mxu0 0
        %2536 = vmatpush1.bf16.msra.mxu0 0
        %2537 = vmatprep.subr.bf16.mxu0 0
        %2538 = vmatpush1.bf16.msra.mxu0 0
        %2539 = vmatprep.subr.bf16.mxu0 0
        %2540 = vmatpush1.bf16.msra.mxu0 0
        %2541 = vmatprep.subr.bf16.mxu0 0
        %2542 = vmatpush1.bf16.msra.mxu0 0
        %2543 = vmatprep.mubr.bf16.mxu0 0
        %2544 = vmatmul.mubr.bf16.gmra.mrb[0].mxu0 %v2070
        %v2545 = vpop.f32.mrb[0].mxu0
        %v2546 = vadd.f32 0.0, %v2545
        %v2547 = vpop.f32.mrb[0].mxu0
        %v2548 = vpop.f32.mrb[0].mxu0
        %v2549 = vadd.f32 0.0, %v2548
        %v2550 = vpop.f32.mrb[0].mxu0
        %2551 = vmatprep.mubr.bf16.mxu0 0
        %2552 = vmatmul.mubr.bf16.gmra.mrb[0].mxu0 %v2072
        %v2553 = vpop.f32.mrb[0].mxu0
        %v2554 = vadd.f32 0.0, %v2553
        %v2555 = vpop.f32.mrb[0].mxu0
        %v2556 = vpop.f32.mrb[0].mxu0
        %v2557 = vadd.f32 0.0, %v2556
        %v2558 = vpop.f32.mrb[0].mxu0
        %2559 = vmatprep.mubr.bf16.mxu0 0
        %2560 = vmatmul.mubr.bf16.gmra.mrb[0].mxu0 %v2074
        %v2561 = vpop.f32.mrb[0].mxu0
        %v2562 = vadd.f32 0.0, %v2561
        %v2563 = vpop.f32.mrb[0].mxu0
        %v2564 = vpop.f32.mrb[0].mxu0
        %v2565 = vadd.f32 0.0, %v2564
        %v2566 = vpop.f32.mrb[0].mxu0
        %2567 = vmatprep.mubr.bf16.mxu0 0
        %2568 = vmatmul.mubr.bf16.gmra.mrb[0].mxu0 %v2076
        %v2569 = vpop.f32.mrb[0].mxu0
        %v2570 = vadd.f32 0.0, %v2569
        %v2571 = vpop.f32.mrb[0].mxu0
        %v2572 = vpop.f32.mrb[0].mxu0
        %v2573 = vadd.f32 0.0, %v2572
        %v2574 = vpop.f32.mrb[0].mxu0
        %2575 = vmatprep.mubr.bf16.mxu0 0
        %2576 = vmatmul.mubr.bf16.gmra.mrb[0].mxu0 %v2078
        %v2577 = vpop.f32.mrb[0].mxu0
        %v2578 = vadd.f32 0.0, %v2577
        %v2579 = vpop.f32.mrb[0].mxu0
        %v2580 = vpop.f32.mrb[0].mxu0
        %v2581 = vadd.f32 0.0, %v2580
        %v2582 = vpop.f32.mrb[0].mxu0
        %2583 = vmatprep.mubr.bf16.mxu0 0
        %2584 = vmatmul.mubr.bf16.gmra.mrb[0].mxu0 %v2080
        %v2585 = vpop.f32.mrb[0].mxu0
        %v2586 = vadd.f32 0.0, %v2585
        %v2587 = vpop.f32.mrb[0].mxu0
        %v2588 = vpop.f32.mrb[0].mxu0
        %v2589 = vadd.f32 0.0, %v2588
        %v2590 = vpop.f32.mrb[0].mxu0
        %2591 = vmatprep.mubr.bf16.mxu0 0
        %2592 = vmatmul.mubr.bf16.gmra.mrb[0].mxu0 %v2082
        %v2593 = vpop.f32.mrb[0].mxu0
        %v2594 = vadd.f32 0.0, %v2593
        %v2595 = vpop.f32.mrb[0].mxu0
        %v2596 = vpop.f32.mrb[0].mxu0
        %v2597 = vadd.f32 0.0, %v2596
        %v2598 = vpop.f32.mrb[0].mxu0
        %2599 = vmatprep.mubr.bf16.mxu0 0
        %2600 = vmatmul.mubr.bf16.gmra.mrb[0].mxu0 %v2084
        %v2601 = vpop.f32.mrb[0].mxu0
        %v2602 = vadd.f32 0.0, %v2601
        %v2603 = vpop.f32.mrb[0].mxu0
        %v2604 = vpop.f32.mrb[0].mxu0
        %v2605 = vadd.f32 0.0, %v2604
        %v2606 = vpop.f32.mrb[0].mxu0
        %2607 = vmatprep.mubr.bf16.mxu0 0
        %2608 = vmatmul.mubr.bf16.gmra.mrb[0].mxu0 %v2086
        %v2609 = vpop.f32.mrb[0].mxu0
        %v2610 = vadd.f32 0.0, %v2609
        %v2611 = vpop.f32.mrb[0].mxu0
        %v2612 = vpop.f32.mrb[0].mxu0
        %v2613 = vadd.f32 0.0, %v2612
        %v2614 = vpop.f32.mrb[0].mxu0
        %2615 = vmatprep.mubr.bf16.mxu0 0
        %2616 = vmatmul.mubr.bf16.gmra.mrb[0].mxu0 %v2088
        %v2617 = vpop.f32.mrb[0].mxu0
        %v2618 = vadd.f32 0.0, %v2617
        %v2619 = vpop.f32.mrb[0].mxu0
        %v2620 = vpop.f32.mrb[0].mxu0
        %v2621 = vadd.f32 0.0, %v2620
        %v2622 = vpop.f32.mrb[0].mxu0
        %2623 = vmatprep.mubr.bf16.mxu0 0
        %2624 = vmatmul.mubr.bf16.gmra.mrb[0].mxu0 %v2090
        %v2625 = vpop.f32.mrb[0].mxu0
        %v2626 = vadd.f32 0.0, %v2625
        %v2627 = vpop.f32.mrb[0].mxu0
        %v2628 = vpop.f32.mrb[0].mxu0
        %v2629 = vadd.f32 0.0, %v2628
        %v2630 = vpop.f32.mrb[0].mxu0
        %2631 = vmatprep.mubr.bf16.mxu0 0
        %2632 = vmatmul.mubr.bf16.gmra.mrb[0].mxu0 %v2092
        %v2633 = vpop.f32.mrb[0].mxu0
        %v2634 = vadd.f32 0.0, %v2633
        %v2635 = vpop.f32.mrb[0].mxu0
        %v2636 = vpop.f32.mrb[0].mxu0
        %v2637 = vadd.f32 0.0, %v2636
        %v2638 = vpop.f32.mrb[0].mxu0
        %2639 = vmatprep.mubr.bf16.mxu0 0
        %2640 = vmatmul.mubr.bf16.gmra.mrb[0].mxu0 %v2094
        %v2641 = vpop.f32.mrb[0].mxu0
        %v2642 = vadd.f32 0.0, %v2641
        %v2643 = vpop.f32.mrb[0].mxu0
        %v2644 = vpop.f32.mrb[0].mxu0
        %v2645 = vadd.f32 0.0, %v2644
        %v2646 = vpop.f32.mrb[0].mxu0
        %2647 = vmatprep.mubr.bf16.mxu0 0
        %2648 = vmatmul.mubr.bf16.gmra.mrb[0].mxu0 %v2096
        %v2649 = vpop.f32.mrb[0].mxu0
        %v2650 = vadd.f32 0.0, %v2649
        %v2651 = vpop.f32.mrb[0].mxu0
        %v2652 = vpop.f32.mrb[0].mxu0
        %v2653 = vadd.f32 0.0, %v2652
        %v2654 = vpop.f32.mrb[0].mxu0
        %2655 = vmatprep.mubr.bf16.mxu0 0
        %2656 = vmatmul.mubr.bf16.gmra.mrb[0].mxu0 %v2098
        %v2657 = vpop.f32.mrb[0].mxu0
        %v2658 = vadd.f32 0.0, %v2657
        %v2659 = vpop.f32.mrb[0].mxu0
        %v2660 = vpop.f32.mrb[0].mxu0
        %v2661 = vadd.f32 0.0, %v2660
        %v2662 = vpop.f32.mrb[0].mxu0
        %2663 = vmatprep.mubr.bf16.mxu0 0
        %2664 = vmatmul.mubr.bf16.gmra.mrb[0].mxu0 %v2509
        %v2665 = vpop.f32.mrb[0].mxu0
        %v2666 = vadd.f32 0.0, %v2665
        %v2667 = vpop.f32.mrb[0].mxu0
        %v2668 = vpop.f32.mrb[0].mxu0
        %v2669 = vadd.f32 0.0, %v2668
        %v2670 = vpop.f32.mrb[0].mxu0
        %2671 = vdwg.mxu0
        %v2672 = vadd.f32 %v2334, %v2546
        %v2673 = vadd.f32 %v2337, %v2549
        %v2674 = vadd.f32 %v2342, %v2554
        %v2675 = vadd.f32 %v2345, %v2557
        %v2676 = vadd.f32 %v2350, %v2562
        %v2677 = vadd.f32 %v2353, %v2565
        %v2678 = vadd.f32 %v2358, %v2570
        %v2679 = vadd.f32 %v2361, %v2573
        %v2680 = vadd.f32 %v2366, %v2578
        %v2681 = vadd.f32 %v2369, %v2581
        %v2682 = vadd.f32 %v2374, %v2586
        %v2683 = vadd.f32 %v2377, %v2589
        %v2684 = vadd.f32 %v2382, %v2594
        %v2685 = vadd.f32 %v2385, %v2597
        %v2686 = vadd.f32 %v2390, %v2602
        %v2687 = vadd.f32 %v2393, %v2605
        %v2688 = vadd.f32 %v2398, %v2610
        %v2689 = vadd.f32 %v2401, %v2613
        %v2690 = vadd.f32 %v2406, %v2618
        %v2691 = vadd.f32 %v2409, %v2621
        %v2692 = vadd.f32 %v2414, %v2626
        %v2693 = vadd.f32 %v2417, %v2629
        %v2694 = vadd.f32 %v2422, %v2634
        %v2695 = vadd.f32 %v2425, %v2637
        %v2696 = vadd.f32 %v2430, %v2642
        %v2697 = vadd.f32 %v2433, %v2645
        %v2698 = vadd.f32 %v2438, %v2650
        %v2699 = vadd.f32 %v2441, %v2653
        %v2700 = vadd.f32 %v2446, %v2658
        %v2701 = vadd.f32 %v2449, %v2661
        %v2702 = vadd.f32 %v2454, %v2666
        %v2703 = vadd.f32 %v2457, %v2669
        %v2704 = vld [vmem:[%s5] sm:$0x1]
        %v2706 = vlaneseq
        %v2707 = vshrl.u32 %v2706, 7
        %v2708 = vsub.s32 0, %v2707
        %v2709 = vrot.slane %v2704, %v2708
        %v2711 = vadd.f32 %v2672, %v2709
        %v2712 = vadd.f32 %v2673, %v2709
        %v2713 = vadd.f32 %v2674, %v2709
        %v2714 = vadd.f32 %v2675, %v2709
        %v2715 = vadd.f32 %v2676, %v2709
        %v2716 = vadd.f32 %v2677, %v2709
        %v2717 = vadd.f32 %v2678, %v2709
        %v2718 = vadd.f32 %v2679, %v2709
        %v2719 = vadd.f32 %v2680, %v2709
        %v2720 = vadd.f32 %v2681, %v2709
        %v2721 = vadd.f32 %v2682, %v2709
        %v2722 = vadd.f32 %v2683, %v2709
        %v2723 = vadd.f32 %v2684, %v2709
        %v2724 = vadd.f32 %v2685, %v2709
        %v2725 = vadd.f32 %v2686, %v2709
        %v2726 = vadd.f32 %v2687, %v2709
        %v2727 = vadd.f32 %v2688, %v2709
        %v2728 = vadd.f32 %v2689, %v2709
        %v2729 = vadd.f32 %v2690, %v2709
        %v2730 = vadd.f32 %v2691, %v2709
        %v2731 = vadd.f32 %v2692, %v2709
        %v2732 = vadd.f32 %v2693, %v2709
        %v2733 = vadd.f32 %v2694, %v2709
        %v2734 = vadd.f32 %v2695, %v2709
        %v2735 = vadd.f32 %v2696, %v2709
        %v2736 = vadd.f32 %v2697, %v2709
        %v2737 = vadd.f32 %v2698, %v2709
        %v2738 = vadd.f32 %v2699, %v2709
        %v2739 = vadd.f32 %v2700, %v2709
        %v2740 = vadd.f32 %v2701, %v2709
        %v2741 = vadd.f32 %v2702, %v2709
        %v2742 = vadd.f32 %v2703, %v2709
        %v2743 = vmax.f32 %v2711, 0.0
        %v2744 = vmax.f32 %v2712, 0.0
        %v2745 = vmax.f32 %v2713, 0.0
        %v2746 = vmax.f32 %v2714, 0.0
        %v2747 = vmax.f32 %v2715, 0.0
        %v2748 = vmax.f32 %v2716, 0.0
        %v2749 = vmax.f32 %v2717, 0.0
        %v2750 = vmax.f32 %v2718, 0.0
        %v2751 = vmax.f32 %v2719, 0.0
        %v2752 = vmax.f32 %v2720, 0.0
        %v2753 = vmax.f32 %v2721, 0.0
        %v2754 = vmax.f32 %v2722, 0.0
        %v2755 = vmax.f32 %v2723, 0.0
        %v2756 = vmax.f32 %v2724, 0.0
        %v2757 = vmax.f32 %v2725, 0.0
        %v2758 = vmax.f32 %v2726, 0.0
        %v2759 = vmax.f32 %v2727, 0.0
        %v2760 = vmax.f32 %v2728, 0.0
        %v2761 = vmax.f32 %v2729, 0.0
        %v2762 = vmax.f32 %v2730, 0.0
        %v2763 = vmax.f32 %v2731, 0.0
        %v2764 = vmax.f32 %v2732, 0.0
        %v2765 = vmax.f32 %v2733, 0.0
        %v2766 = vmax.f32 %v2734, 0.0
        %v2767 = vmax.f32 %v2735, 0.0
        %v2768 = vmax.f32 %v2736, 0.0
        %v2769 = vmax.f32 %v2737, 0.0
        %v2770 = vmax.f32 %v2738, 0.0
        %v2771 = vmax.f32 %v2739, 0.0
        %v2772 = vmax.f32 %v2740, 0.0
        %v2773 = vmax.f32 %v2741, 0.0
        %v2774 = vmax.f32 %v2742, 0.0
        %v2775 = vmin.f32 %v2743, 6.0
        %v2776 = vmin.f32 %v2744, 6.0
        %v2777 = vmin.f32 %v2745, 6.0
        %v2778 = vmin.f32 %v2746, 6.0
        %v2779 = vmin.f32 %v2747, 6.0
        %v2780 = vmin.f32 %v2748, 6.0
        %v2781 = vmin.f32 %v2749, 6.0
        %v2782 = vmin.f32 %v2750, 6.0
        %v2783 = vmin.f32 %v2751, 6.0
        %v2784 = vmin.f32 %v2752, 6.0
        %v2785 = vmin.f32 %v2753, 6.0
        %v2786 = vmin.f32 %v2754, 6.0
        %v2787 = vmin.f32 %v2755, 6.0
        %v2788 = vmin.f32 %v2756, 6.0
        %v2789 = vmin.f32 %v2757, 6.0
        %v2790 = vmin.f32 %v2758, 6.0
        %v2791 = vmin.f32 %v2759, 6.0
        %v2792 = vmin.f32 %v2760, 6.0
        %v2793 = vmin.f32 %v2761, 6.0
        %v2794 = vmin.f32 %v2762, 6.0
        %v2795 = vmin.f32 %v2763, 6.0
        %v2796 = vmin.f32 %v2764, 6.0
        %v2797 = vmin.f32 %v2765, 6.0
        %v2798 = vmin.f32 %v2766, 6.0
        %v2799 = vmin.f32 %v2767, 6.0
        %v2800 = vmin.f32 %v2768, 6.0
        %v2801 = vmin.f32 %v2769, 6.0
        %v2802 = vmin.f32 %v2770, 6.0
        %v2803 = vmin.f32 %v2771, 6.0
        %v2804 = vmin.f32 %v2772, 6.0
        %v2805 = vmin.f32 %v2773, 6.0
        %v2806 = vmin.f32 %v2774, 6.0
        %2807 = vst.msk [vmem:[%s310] sm:$0xff] %vm538, %v2775
        %2808 = vst.msk [vmem:[%s310 + $0x8] sm:$0xff] %vm538, %v2776
        %2809 = vst.msk [vmem:[%s310 + $0x10] sm:$0xff] %vm538, %v2777
        %2810 = vst.msk [vmem:[%s310 + $0x18] sm:$0xff] %vm538, %v2778
        %2811 = vst.msk [vmem:[%s310 + $0x20] sm:$0xff] %vm538, %v2779
        %2812 = vst.msk [vmem:[%s310 + $0x28] sm:$0xff] %vm538, %v2780
        %2813 = vst.msk [vmem:[%s310 + $0x30] sm:$0xff] %vm538, %v2781
        %2814 = vst.msk [vmem:[%s310 + $0x38] sm:$0xff] %vm538, %v2782
        %2815 = vst.msk [vmem:[%s310 + $0x40] sm:$0xff] %vm538, %v2783
        %2816 = vst.msk [vmem:[%s310 + $0x48] sm:$0xff] %vm538, %v2784
        %2817 = vst.msk [vmem:[%s310 + $0x50] sm:$0xff] %vm538, %v2785
        %2818 = vst.msk [vmem:[%s310 + $0x58] sm:$0xff] %vm538, %v2786
        %2819 = vst.msk [vmem:[%s310 + $0x60] sm:$0xff] %vm538, %v2787
        %2820 = vst.msk [vmem:[%s310 + $0x68] sm:$0xff] %vm538, %v2788
        %2821 = vst.msk [vmem:[%s310 + $0x70] sm:$0xff] %vm538, %v2789
        %2822 = vst.msk [vmem:[%s310 + $0x78] sm:$0xff] %vm538, %v2790
        %2823 = vst.msk [vmem:[%s310 + $0x80] sm:$0xff] %vm538, %v2791
        %2824 = vst.msk [vmem:[%s310 + $0x88] sm:$0xff] %vm538, %v2792
        %2825 = vst.msk [vmem:[%s310 + $0x90] sm:$0xff] %vm538, %v2793
        %2826 = vst.msk [vmem:[%s310 + $0x98] sm:$0xff] %vm538, %v2794
        %2827 = vst.msk [vmem:[%s310 + $0xa0] sm:$0xff] %vm538, %v2795
        %2828 = vst.msk [vmem:[%s310 + $0xa8] sm:$0xff] %vm538, %v2796
        %2829 = vst.msk [vmem:[%s310 + $0xb0] sm:$0xff] %vm538, %v2797
        %2830 = vst.msk [vmem:[%s310 + $0xb8] sm:$0xff] %vm538, %v2798
        %2831 = vst.msk [vmem:[%s310 + $0xc0] sm:$0xff] %vm538, %v2799
        %2832 = vst.msk [vmem:[%s310 + $0xc8] sm:$0xff] %vm538, %v2800
        %2833 = vst.msk [vmem:[%s310 + $0xd0] sm:$0xff] %vm538, %v2801
        %2834 = vst.msk [vmem:[%s310 + $0xd8] sm:$0xff] %vm538, %v2802
        %2835 = vst.msk [vmem:[%s310 + $0xe0] sm:$0xff] %vm538, %v2803
        %2836 = vst.msk [vmem:[%s310 + $0xe8] sm:$0xff] %vm538, %v2804
        %2837 = vst.msk [vmem:[%s310 + $0xf0] sm:$0xff] %vm538, %v2805
        %2838 = vst.msk [vmem:[%s310 + $0xf8] sm:$0xff] %vm538, %v2806
        %s2839 = sand.u32 %s171, 1
        %s2840 = scalar_lea.sflag [#allocation6], %s2839
        %s2841 = sand.u32 %s171, 1
        %s2842 = smul.addr %s2841, 256
        %s2843 = scalar_lea.vmem [#allocation9], %s2842
        // Predicated region
        $region53: #{tpu_custom_call.1} parent=43 // pred_check
          %p2844 = pneg %p181
        $region54: #{tpu_custom_call.1} parent=43 // pred_check_branch
          %2846 = sbr.rel (%p2844) target = $region56
        $region55: #{tpu_custom_call.1} parent=43 // pred_region
          %s2848 = ssub.s32 4096, 4096
          %2849 = vsyncadd %s2840, %s2848
          %s2850 = smul.addr %s27, 32
          %s2851 = smul.addr %s2850, 128
          %s2852 = scalar_lea.hbm %s6, %s2851
          %s2853 = sshll.u32 %s2843, 4
          %s2854 = int_to_ptr.vmem [resolvable:$true] %s2853
          %2859 = dma.vmem_to_hbm [thread:$0]  %s2854, 4096, %s2852, %s2840, 128, 128, 8
        $region56: #{tpu_custom_call.1} parent=43 // pred_fallthru
          _
      $region44: #{tpu_custom_call.1} parent=5 // pred_fallthru
        _
      %p2860 = scmp.le.s32.totalorder 2, %s22
      // Predicated region
      $region57: #{tpu_custom_call.1} parent=5 // pred_check
        %p2861 = pneg %p2860
      $region58: #{tpu_custom_call.1} parent=5 // pred_check_branch
        %2863 = sbr.rel (%p2861) target = $region60
      $region59: #{tpu_custom_call.1} parent=5 // pred_region
        %s2864 = ssub.s32 %s22, 2
        // Predicated region
        $region61: #{tpu_custom_call.1} parent=59 // pred_check
          %p2865 = pneg %p187
        $region62: #{tpu_custom_call.1} parent=59 // pred_check_branch
          %2867 = sbr.rel (%p2865) target = $region64
        $region63: #{tpu_custom_call.1} parent=59 // pred_region
          %s2868 = sand.u32 %s172, 1
          %s2869 = scalar_lea.sflag [#allocation6], %s2868
          %s2870 = sand.u32 %s172, 1
          %s2871 = smul.addr %s2870, 256
          %s2872 = scalar_lea.vmem [#allocation9], %s2871
          %2873 = dma.done %s2869, 4096
        $region64: #{tpu_custom_call.1} parent=59 // pred_fallthru
          _
      $region60: #{tpu_custom_call.1} parent=5 // pred_fallthru
        _
    $region6: #{tpu_custom_call.1} parent=1 // loop_footer
      %s26 = sadd.s32 1, %s22
    $region7: #{tpu_custom_call.1} parent=1 // loop_footer_branch
      %21 = sbr.rel target = $region3
    $region8: #{tpu_custom_call.1} parent=1 // loop_exit
      _
    %2874 = vsyncpa [#allocation5], 1
    %s2875 = scalar_lea.sflag [#allocation5], 1
    %2876 = vsyncpa %s2875, 1
    %2877 = vsyncpa [#allocation8], 1
    %s2878 = scalar_lea.sflag [#allocation8], 1
    %2879 = vsyncpa %s2878, 1
    %2880 = vsyncpa [#allocation6], 1
    %s2881 = scalar_lea.sflag [#allocation6], 1
    %2882 = vsyncpa %s2881, 1

</llo_original>
